<compile_context>
chip_gen: v7x
topology: tpu7x:2x2x1
jax: 0.10.0
libtpu: 0.0.40
codegen_flags: <defaults>
</compile_context>

<pallas_src>
import functools
import math

import jax
import jax.numpy as jnp
from jax import lax
from jax.experimental import pallas as pl
from jax.experimental.pallas import tpu as pltpu


def _round_up(x, m):
    return ((x + m - 1) // m) * m


# Taylor coefficients of sin(t)/t and cos(t) in w = t*t, valid for |t| <= pi.
# Truncation error < 8e-7 (sin) / < 2e-7 (cos) at |t| = pi -- below f32 phase
# quantization for this workload.
_SIN_COEFFS = (
    1.0,
    -1.0 / 6.0,
    1.0 / 120.0,
    -1.0 / 5040.0,
    1.0 / 362880.0,
    -1.0 / 39916800.0,
    1.0 / 6227020800.0,
    -1.0 / 1307674368000.0,
)
_COS_COEFFS = (
    1.0,
    -1.0 / 2.0,
    1.0 / 24.0,
    -1.0 / 720.0,
    1.0 / 40320.0,
    -1.0 / 3628800.0,
    1.0 / 479001600.0,
    -1.0 / 87178291200.0,
    1.0 / 20922789888000.0,
)


def _gfft_kernel(x_ref, b_ref, o_ref, *, mapping):
    # z = x @ B in "turns".  K = num_input_channels is tiny, so the matmul is
    # nowhere near the binding VALU slot; HIGHEST keeps it at full f32 so the
    # large phase is not rounded through bf16 passes.
    z = jnp.dot(
        x_ref[...],
        b_ref[...],
        preferred_element_type=jnp.float32,
        precision=lax.Precision.HIGHEST,
    )

    # One shared range reduction for both sin and cos (period 1 in z):
    #   r = z - round(z) in [-1/2, 1/2]   (exact: Sterbenz subtraction)
    #   t = 2*pi*r        in [-pi, pi]
    r = z - jnp.round(z)
    t = (2.0 * math.pi) * r
    w = t * t

    # Short odd/even polynomials sharing w (Horner).
    sp = _SIN_COEFFS[-1]
    for c in _SIN_COEFFS[-2::-1]:
        sp = sp * w + c
    cp = _COS_COEFFS[-1]
    for c in _COS_COEFFS[-2::-1]:
        cp = cp * w + c

    # Two lane-aligned slice stores (unmasked when mapping % 128 == 0).
    o_ref[:, :mapping] = (t * sp).astype(o_ref.dtype)
    o_ref[:, mapping:] = cp.astype(o_ref.dtype)


def _pick_tm(m_rows, tm_target):
    """Row-tile choice: biggest tile that still leaves a few grid steps."""
    tm_target = max(8, _round_up(int(tm_target), 8))
    if m_rows <= tm_target:
        # One tile covers everything.  Don't shrink it: nothing to pipeline,
        # and a block dim equal to the full array dim is always layout-legal.
        return m_rows
    if m_rows >= 4 * tm_target:
        return tm_target
    # Medium M: aim for ~4 sublane-aligned steps so step i's output writeback
    # overlaps step i+1's compute (and both v7x TensorCores get work), but
    # never drop below 512 rows (per-step overhead).
    return min(tm_target, max(512, _round_up(pl.cdiv(m_rows, 4), 8)))


def gaussian_fourier_feature_transform(x, B_mat, *, tm=2048):
    """x: [batches, n, C] float32; B_mat: [C, mapping_size] float32."""
    batches, n, c = x.shape
    mapping = int(B_mat.shape[1])
    m_rows = batches * n

    xf = x.reshape(m_rows, c)
    tm_eff = _pick_tm(m_rows, tm)
    grid_m = pl.cdiv(m_rows, tm_eff)  # non-divisible grid: edge stores masked

    kernel = functools.partial(_gfft_kernel, mapping=mapping)

    out = pl.pallas_call(
        kernel,
        out_shape=jax.ShapeDtypeStruct((m_rows, 2 * mapping), x.dtype),
        grid_spec=pltpu.PrefetchScalarGridSpec(
            num_scalar_prefetch=0,
            grid=(grid_m,),
            in_specs=[
                pl.BlockSpec((tm_eff, c), lambda i: (i, 0)),    # row tile of x
                pl.BlockSpec((c, mapping), lambda i: (0, 0)),   # full B, resident
            ],
            out_specs=pl.BlockSpec((tm_eff, 2 * mapping), lambda i: (i, 0)),
        ),
        compiler_params=pltpu.CompilerParams(
            dimension_semantics=("parallel",),
            vmem_limit_bytes=32 * 1024 * 1024,
        ),
    )(xf, B_mat.astype(jnp.float32))

    return out.reshape(batches, n, 2 * mapping)


if __name__ == "__main__":
    import numpy as np

    def reference_f64(x, B):
        x64 = np.asarray(x, dtype=np.float64)
        B64 = np.asarray(B, dtype=np.float64)
        b, n, c = x64.shape
        y = 2.0 * np.pi * (x64.reshape(-1, c) @ B64)
        return np.concatenate([np.sin(y), np.cos(y)], axis=-1).reshape(b, n, -1)

    batches, n, num_input_channels = 2, 64, 4
    mapping_size = 256
    scale = 10.0

    key = jax.random.PRNGKey(0)
    kx, kb, kx2 = jax.random.split(key, 3)

    x = jax.random.normal(kx, (batches, n, num_input_channels), dtype=jnp.float32)
    B_mat = jax.random.normal(
        kb, (num_input_channels, mapping_size), dtype=jnp.float32) * scale

    out = jax.block_until_ready(gaussian_fourier_feature_transform(x, B_mat))
    assert out.shape == (batches, n, 2 * mapping_size)
    ref = reference_f64(x, B_mat)
    err = float(np.max(np.abs(np.asarray(out, dtype=np.float64) - ref)))
    # |2*pi*(x@B)| reaches O(500) rad here, so ANY float32 evaluation carries
    # up to ~1e-4 of phase-quantization error in sin/cos; 1e-3 still catches
    # real bugs (wrong phase / swapped halves), which are O(1).
    assert err < 1e-3, f"max abs err vs float64 reference: {err}"

    # Second shape: rows not divisible by the tile -> exercises the masked
    # edge-block store path (no wrapper-side padding / slicing of the output).
    x2 = jax.random.normal(kx2, (3, 100, num_input_channels), dtype=jnp.float32)
    out2 = jax.block_until_ready(
        gaussian_fourier_feature_transform(x2, B_mat, tm=128))
    assert out2.shape == (3, 100, 2 * mapping_size)
    ref2 = reference_f64(x2, B_mat)
    err2 = float(np.max(np.abs(np.asarray(out2, dtype=np.float64) - ref2)))
    assert err2 < 1e-3, f"max abs err vs float64 reference: {err2}"

    print("KERNEL_OK")
</pallas_src>

<mosaic_0001>
module attributes {stable_mosaic.version = 11 : i64} {
  func.func @_gfft_kernel(%arg0: i32, %arg1: memref<128x4xf32, #tpu.memory_space<vmem>>, %arg2: memref<4x256xf32, #tpu.memory_space<vmem>>, %arg3: memref<128x512xf32, #tpu.memory_space<vmem>>) attributes {dimension_semantics = [#tpu.dimension_semantics<parallel>], iteration_bounds = array<i64: 1>, scalar_prefetch = 0 : i64, scratch_operands = 0 : i64, tpu.core_type = #tpu.core_type<tc>, window_params = [{transform_indices = @transform_0, window_bounds = array<i64: 128, 4>}, {pipeline_mode = #tpu.pipeline_mode<synchronous>, transform_indices = @transform_1, window_bounds = array<i64: 4, 256>}, {transform_indices = @transform_2, window_bounds = array<i64: 128, 512>}]} {
    %c0 = arith.constant 0 : index
    %c0_0 = arith.constant 0 : index
    %0 = vector.load %arg1[%c0, %c0_0] : memref<128x4xf32, #tpu.memory_space<vmem>>, vector<128x4xf32>
    %c0_1 = arith.constant 0 : index
    %c0_2 = arith.constant 0 : index
    %1 = vector.load %arg2[%c0_1, %c0_2] : memref<4x256xf32, #tpu.memory_space<vmem>>, vector<4x256xf32>
    %cst = arith.constant dense<0.000000e+00> : vector<128x256xf32>
    %2 = tpu.matmul %0, %1, %cst {dimension_numbers = #tpu.dot_dimension_numbers<[1], [0], [0], [1], [0, 0, 1, 1], [], []>, precision = #tpu.contract_precision<fp32>} : vector<128x4xf32>, vector<4x256xf32>, vector<128x256xf32> -> vector<128x256xf32>
    %3 = math.roundeven %2 : vector<128x256xf32>
    %4 = arith.subf %2, %3 : vector<128x256xf32>
    %cst_3 = arith.constant 6.28318548 : f32
    %5 = vector.broadcast %cst_3 : f32 to vector<128x256xf32>
    %6 = arith.mulf %5, %4 : vector<128x256xf32>
    %7 = arith.mulf %6, %6 : vector<128x256xf32>
    %cst_4 = arith.constant -7.6471636E-13 : f32
    %8 = vector.broadcast %cst_4 : f32 to vector<128x256xf32>
    %9 = arith.mulf %8, %7 : vector<128x256xf32>
    %cst_5 = arith.constant 1.60590444E-10 : f32
    %10 = vector.broadcast %cst_5 : f32 to vector<128x256xf32>
    %11 = arith.addf %9, %10 : vector<128x256xf32>
    %12 = arith.mulf %11, %7 : vector<128x256xf32>
    %cst_6 = arith.constant -2.50521079E-8 : f32
    %13 = vector.broadcast %cst_6 : f32 to vector<128x256xf32>
    %14 = arith.addf %12, %13 : vector<128x256xf32>
    %15 = arith.mulf %14, %7 : vector<128x256xf32>
    %cst_7 = arith.constant 2.75573188E-6 : f32
    %16 = vector.broadcast %cst_7 : f32 to vector<128x256xf32>
    %17 = arith.addf %15, %16 : vector<128x256xf32>
    %18 = arith.mulf %17, %7 : vector<128x256xf32>
    %cst_8 = arith.constant -1.98412701E-4 : f32
    %19 = vector.broadcast %cst_8 : f32 to vector<128x256xf32>
    %20 = arith.addf %18, %19 : vector<128x256xf32>
    %21 = arith.mulf %20, %7 : vector<128x256xf32>
    %cst_9 = arith.constant 0.00833333377 : f32
    %22 = vector.broadcast %cst_9 : f32 to vector<128x256xf32>
    %23 = arith.addf %21, %22 : vector<128x256xf32>
    %24 = arith.mulf %23, %7 : vector<128x256xf32>
    %cst_10 = arith.constant -0.166666672 : f32
    %25 = vector.broadcast %cst_10 : f32 to vector<128x256xf32>
    %26 = arith.addf %24, %25 : vector<128x256xf32>
    %27 = arith.mulf %26, %7 : vector<128x256xf32>
    %cst_11 = arith.constant 1.000000e+00 : f32
    %28 = vector.broadcast %cst_11 : f32 to vector<128x256xf32>
    %29 = arith.addf %27, %28 : vector<128x256xf32>
    %cst_12 = arith.constant 4.77947726E-14 : f32
    %30 = vector.broadcast %cst_12 : f32 to vector<128x256xf32>
    %31 = arith.mulf %30, %7 : vector<128x256xf32>
    %cst_13 = arith.constant -1.14707454E-11 : f32
    %32 = vector.broadcast %cst_13 : f32 to vector<128x256xf32>
    %33 = arith.addf %31, %32 : vector<128x256xf32>
    %34 = arith.mulf %33, %7 : vector<128x256xf32>
    %cst_14 = arith.constant 2.08767559E-9 : f32
    %35 = vector.broadcast %cst_14 : f32 to vector<128x256xf32>
    %36 = arith.addf %34, %35 : vector<128x256xf32>
    %37 = arith.mulf %36, %7 : vector<128x256xf32>
    %cst_15 = arith.constant -2.755732E-7 : f32
    %38 = vector.broadcast %cst_15 : f32 to vector<128x256xf32>
    %39 = arith.addf %37, %38 : vector<128x256xf32>
    %40 = arith.mulf %39, %7 : vector<128x256xf32>
    %cst_16 = arith.constant 2.48015876E-5 : f32
    %41 = vector.broadcast %cst_16 : f32 to vector<128x256xf32>
    %42 = arith.addf %40, %41 : vector<128x256xf32>
    %43 = arith.mulf %42, %7 : vector<128x256xf32>
    %cst_17 = arith.constant -0.00138888892 : f32
    %44 = vector.broadcast %cst_17 : f32 to vector<128x256xf32>
    %45 = arith.addf %43, %44 : vector<128x256xf32>
    %46 = arith.mulf %45, %7 : vector<128x256xf32>
    %cst_18 = arith.constant 0.0416666679 : f32
    %47 = vector.broadcast %cst_18 : f32 to vector<128x256xf32>
    %48 = arith.addf %46, %47 : vector<128x256xf32>
    %49 = arith.mulf %48, %7 : vector<128x256xf32>
    %cst_19 = arith.constant -5.000000e-01 : f32
    %50 = vector.broadcast %cst_19 : f32 to vector<128x256xf32>
    %51 = arith.addf %49, %50 : vector<128x256xf32>
    %52 = arith.mulf %51, %7 : vector<128x256xf32>
    %cst_20 = arith.constant 1.000000e+00 : f32
    %53 = vector.broadcast %cst_20 : f32 to vector<128x256xf32>
    %54 = arith.addf %52, %53 : vector<128x256xf32>
    %55 = arith.mulf %6, %29 : vector<128x256xf32>
    %c0_21 = arith.constant 0 : index
    %c0_22 = arith.constant 0 : index
    %56 = vector.load %arg3[%c0_21, %c0_22] : memref<128x512xf32, #tpu.memory_space<vmem>>, vector<128x256xf32>
    tpu.vector_store %arg3[%c0_21, %c0_22], %55 {strides = array<i32>} : memref<128x512xf32, #tpu.memory_space<vmem>>, vector<128x256xf32>,
    %c0_23 = arith.constant 0 : index
    %c256 = arith.constant 256 : index
    %57 = vector.load %arg3[%c0_23, %c256] : memref<128x512xf32, #tpu.memory_space<vmem>>, vector<128x256xf32>
    tpu.vector_store %arg3[%c0_23, %c256], %54 {strides = array<i32>} : memref<128x512xf32, #tpu.memory_space<vmem>>, vector<128x256xf32>,
    return
  }
  func.func @transform_0(%arg0: i32) -> (i32, i32) {
    %c0_i32 = arith.constant 0 : i32
    %c0_i32_0 = arith.constant 0 : i32
    return %arg0, %c0_i32 : i32, i32
  }
  func.func @transform_1(%arg0: i32) -> (i32, i32) {
    %c0_i32 = arith.constant 0 : i32
    %c0_i32_0 = arith.constant 0 : i32
    %c0_i32_1 = arith.constant 0 : i32
    return %c0_i32, %c0_i32_0 : i32, i32
  }
  func.func @transform_2(%arg0: i32) -> (i32, i32) {
    %c0_i32 = arith.constant 0 : i32
    %c0_i32_0 = arith.constant 0 : i32
    return %arg0, %c0_i32 : i32, i32
  }
}

</mosaic_0001>

<llo_original>
// kernel: tpu_custom_call.1
$region0: #{tpu_custom_call.1}
  #allocation0 [shape = 'u32[]', space=smem, size = 0x4, offset = 0x4, fixed_abs, tag = 'smem constant byte address 0x4 - core index']
  #allocation1 [shape = 'u32[144,128]{1,0:T(1,128)}', space=vmem, size = 0x12000, scoped, tag = 'internal scratch']
  %s0 = inlined_call_operand.vmem [shape: f32[128,4], index: 0, kind: input, shape index: {}]
  %s1 = inlined_call_operand.vmem [shape: f32[4,256], index: 1, kind: input, shape index: {}]
  %s2 = inlined_call_operand.hbm [shape: f32[128,512], index: 2, kind: output, shape index: {}]
  %s3 = sld [smem:[#allocation0]]
  $region18: #{tpu_custom_call.1} parent=0
    _
  %s5 = ssub.s32 1, %s3
  %s6 = scalar_select 0, %s5, %s3
  $region1: #{tpu_custom_call.1} parent=0
    #allocation2 [shape = 'u8[262144]{0}', space=vmem, size = 0x40000, scoped, tag = 'output window, operand 0, single buffered']
    #allocation3 [shape = 's32[1]{0}', space=sflag, size = 0x4, scoped, tag = 'scoped memory for tpu_custom_call.1']
    %7 = vsyncpa [#allocation3], 0
    // Predicated region
    $region2: #{tpu_custom_call.1} parent=1 // pred_check
      _
    $region3: #{tpu_custom_call.1} parent=1 // pred_check_branch
      %9 = sbr.rel (0) target = $region5
    $region4: #{tpu_custom_call.1} parent=1 // pred_region
      _
    $region5: #{tpu_custom_call.1} parent=1 // pred_fallthru
      _
    // Predicated region
    $region6: #{tpu_custom_call.1} parent=1 // pred_check
      _
    $region7: #{tpu_custom_call.1} parent=1 // pred_check_branch
      %11 = sbr.rel (0) target = $region9
    $region8: #{tpu_custom_call.1} parent=1 // pred_region
      _
    $region9: #{tpu_custom_call.1} parent=1 // pred_fallthru
      _
    %v12 = vld [vmem:[%s0] sm:$0xff]
    %v13 = vld [vmem:[%s0 + $0x8] sm:$0xff]
    %v14 = vld [vmem:[%s0 + $0x10] sm:$0xff]
    %v15 = vld [vmem:[%s0 + $0x18] sm:$0xff]
    %v16 = vld [vmem:[%s0 + $0x20] sm:$0xff]
    %v17 = vld [vmem:[%s0 + $0x28] sm:$0xff]
    %v18 = vld [vmem:[%s0 + $0x30] sm:$0xff]
    %v19 = vld [vmem:[%s0 + $0x38] sm:$0xff]
    %v20 = vld [vmem:[%s0 + $0x40] sm:$0xff]
    %v21 = vld [vmem:[%s0 + $0x48] sm:$0xff]
    %v22 = vld [vmem:[%s0 + $0x50] sm:$0xff]
    %v23 = vld [vmem:[%s0 + $0x58] sm:$0xff]
    %v24 = vld [vmem:[%s0 + $0x60] sm:$0xff]
    %v25 = vld [vmem:[%s0 + $0x68] sm:$0xff]
    %v26 = vld [vmem:[%s0 + $0x70] sm:$0xff]
    %v27 = vld [vmem:[%s0 + $0x78] sm:$0xff]
    %v28 = vld [vmem:[%s1] sm:$0xff]
    %v30 = vcombine.high %v28, %v28
    %vm31 = vcmask 31744
    %v33 = vsel %vm31, %v12, 0
    %v36 = vsel %vm31, %v13, 0
    %v39 = vsel %vm31, %v14, 0
    %v42 = vsel %vm31, %v15, 0
    %v45 = vsel %vm31, %v16, 0
    %v48 = vsel %vm31, %v17, 0
    %v51 = vsel %vm31, %v18, 0
    %v54 = vsel %vm31, %v19, 0
    %v57 = vsel %vm31, %v20, 0
    %v60 = vsel %vm31, %v21, 0
    %v63 = vsel %vm31, %v22, 0
    %v66 = vsel %vm31, %v23, 0
    %v69 = vsel %vm31, %v24, 0
    %v72 = vsel %vm31, %v25, 0
    %v75 = vsel %vm31, %v26, 0
    %v78 = vsel %vm31, %v27, 0
    %vm80 = vcmask 1043456
    %v81 = vsel %vm80, %v28, 0
    %v83 = vsel %vm80, %v30, 0
    %v85 = vand.u32 %v83, 4294901760
    %86 = vmatprep.subr.mxu0 %v85
    %v87 = vand.u32 %v81, 4294901760
    %88 = vmatpush1.msra.mxu0 %v87
    %89 = vmatprep.subr.mxu0 0.0
    %90 = vmatpush1.msra.mxu0 0.0
    %91 = vmatprep.subr.mxu0 0.0
    %92 = vmatpush1.msra.mxu0 0.0
    %93 = vmatprep.subr.mxu0 0.0
    %94 = vmatpush1.msra.mxu0 0.0
    %95 = vmatprep.subr.mxu0 0.0
    %96 = vmatpush1.msra.mxu0 0.0
    %97 = vmatprep.subr.mxu0 0.0
    %98 = vmatpush1.msra.mxu0 0.0
    %99 = vmatprep.subr.mxu0 0.0
    %100 = vmatpush1.msra.mxu0 0.0
    %101 = vmatprep.subr.mxu0 0.0
    %102 = vmatpush1.msra.mxu0 0.0
    %103 = vmatprep.subr.mxu0 0.0
    %104 = vmatpush1.msra.mxu0 0.0
    %105 = vmatprep.subr.mxu0 0.0
    %106 = vmatpush1.msra.mxu0 0.0
    %107 = vmatprep.subr.mxu0 0.0
    %108 = vmatpush1.msra.mxu0 0.0
    %109 = vmatprep.subr.mxu0 0.0
    %110 = vmatpush1.msra.mxu0 0.0
    %111 = vmatprep.subr.mxu0 0.0
    %112 = vmatpush1.msra.mxu0 0.0
    %113 = vmatprep.subr.mxu0 0.0
    %114 = vmatpush1.msra.mxu0 0.0
    %115 = vmatprep.subr.mxu0 0.0
    %116 = vmatpush1.msra.mxu0 0.0
    %117 = vmatprep.subr.mxu0 0.0
    %118 = vmatpush1.msra.mxu0 0.0
    %119 = vmatprep.subr.mxu0 0.0
    %120 = vmatpush1.msra.mxu0 0.0
    %121 = vmatprep.subr.mxu0 0.0
    %122 = vmatpush1.msra.mxu0 0.0
    %123 = vmatprep.subr.mxu0 0.0
    %124 = vmatpush1.msra.mxu0 0.0
    %125 = vmatprep.subr.mxu0 0.0
    %126 = vmatpush1.msra.mxu0 0.0
    %127 = vmatprep.subr.mxu0 0.0
    %128 = vmatpush1.msra.mxu0 0.0
    %129 = vmatprep.subr.mxu0 0.0
    %130 = vmatpush1.msra.mxu0 0.0
    %131 = vmatprep.subr.mxu0 0.0
    %132 = vmatpush1.msra.mxu0 0.0
    %133 = vmatprep.subr.mxu0 0.0
    %134 = vmatpush1.msra.mxu0 0.0
    %135 = vmatprep.subr.mxu0 0.0
    %136 = vmatpush1.msra.mxu0 0.0
    %137 = vmatprep.subr.mxu0 0.0
    %138 = vmatpush1.msra.mxu0 0.0
    %139 = vmatprep.subr.mxu0 0.0
    %140 = vmatpush1.msra.mxu0 0.0
    %141 = vmatprep.subr.mxu0 0.0
    %142 = vmatpush1.msra.mxu0 0.0
    %143 = vmatprep.subr.mxu0 0.0
    %144 = vmatpush1.msra.mxu0 0.0
    %145 = vmatprep.subr.mxu0 0.0
    %146 = vmatpush1.msra.mxu0 0.0
    %147 = vmatprep.subr.mxu0 0.0
    %148 = vmatpush1.msra.mxu0 0.0
    %149 = vmatprep.subr.mxu0 0.0
    %150 = vmatpush1.msra.mxu0 0.0
    %151 = vmatprep.mubr.f32.mxu0 0.0
    %v152 = vand.u32 %v33, 4294901760
    %v153 = vsub.f32 %v33, %v152
    %v154 = vand.u32 %v153, 4294901760
    %v155 = vsub.f32 %v153, %v154
    %v156 = vand.u32 %v155, 4294901760
    %157 = vmatmul.mubr.f32.gmra.mrb[0].mxu0 %v156
    %v158 = vpop.f32.mrb[0].mxu0
    %v159 = vadd.f32 0.0, %v158
    %v160 = vpop.f32.mrb[0].mxu0
    %v161 = vadd.f32 0.0, %v160
    %162 = vmatprep.mubr.f32.mxu0 0.0
    %v163 = vand.u32 %v36, 4294901760
    %v164 = vsub.f32 %v36, %v163
    %v165 = vand.u32 %v164, 4294901760
    %v166 = vsub.f32 %v164, %v165
    %v167 = vand.u32 %v166, 4294901760
    %168 = vmatmul.mubr.f32.gmra.mrb[0].mxu0 %v167
    %v169 = vpop.f32.mrb[0].mxu0
    %v170 = vadd.f32 0.0, %v169
    %v171 = vpop.f32.mrb[0].mxu0
    %v172 = vadd.f32 0.0, %v171
    %173 = vmatprep.mubr.f32.mxu0 0.0
    %v174 = vand.u32 %v39, 4294901760
    %v175 = vsub.f32 %v39, %v174
    %v176 = vand.u32 %v175, 4294901760
    %v177 = vsub.f32 %v175, %v176
    %v178 = vand.u32 %v177, 4294901760
    %179 = vmatmul.mubr.f32.gmra.mrb[0].mxu0 %v178
    %v180 = vpop.f32.mrb[0].mxu0
    %v181 = vadd.f32 0.0, %v180
    %v182 = vpop.f32.mrb[0].mxu0
    %v183 = vadd.f32 0.0, %v182
    %184 = vmatprep.mubr.f32.mxu0 0.0
    %v185 = vand.u32 %v42, 4294901760
    %v186 = vsub.f32 %v42, %v185
    %v187 = vand.u32 %v186, 4294901760
    %v188 = vsub.f32 %v186, %v187
    %v189 = vand.u32 %v188, 4294901760
    %190 = vmatmul.mubr.f32.gmra.mrb[0].mxu0 %v189
    %v191 = vpop.f32.mrb[0].mxu0
    %v192 = vadd.f32 0.0, %v191
    %v193 = vpop.f32.mrb[0].mxu0
    %v194 = vadd.f32 0.0, %v193
    %195 = vmatprep.mubr.f32.mxu0 0.0
    %v196 = vand.u32 %v45, 4294901760
    %v197 = vsub.f32 %v45, %v196
    %v198 = vand.u32 %v197, 4294901760
    %v199 = vsub.f32 %v197, %v198
    %v200 = vand.u32 %v199, 4294901760
    %201 = vmatmul.mubr.f32.gmra.mrb[0].mxu0 %v200
    %v202 = vpop.f32.mrb[0].mxu0
    %v203 = vadd.f32 0.0, %v202
    %v204 = vpop.f32.mrb[0].mxu0
    %v205 = vadd.f32 0.0, %v204
    %206 = vmatprep.mubr.f32.mxu0 0.0
    %v207 = vand.u32 %v48, 4294901760
    %v208 = vsub.f32 %v48, %v207
    %v209 = vand.u32 %v208, 4294901760
    %v210 = vsub.f32 %v208, %v209
    %v211 = vand.u32 %v210, 4294901760
    %212 = vmatmul.mubr.f32.gmra.mrb[0].mxu0 %v211
    %v213 = vpop.f32.mrb[0].mxu0
    %v214 = vadd.f32 0.0, %v213
    %v215 = vpop.f32.mrb[0].mxu0
    %v216 = vadd.f32 0.0, %v215
    %217 = vmatprep.mubr.f32.mxu0 0.0
    %v218 = vand.u32 %v51, 4294901760
    %v219 = vsub.f32 %v51, %v218
    %v220 = vand.u32 %v219, 4294901760
    %v221 = vsub.f32 %v219, %v220
    %v222 = vand.u32 %v221, 4294901760
    %223 = vmatmul.mubr.f32.gmra.mrb[0].mxu0 %v222
    %v224 = vpop.f32.mrb[0].mxu0
    %v225 = vadd.f32 0.0, %v224
    %v226 = vpop.f32.mrb[0].mxu0
    %v227 = vadd.f32 0.0, %v226
    %228 = vmatprep.mubr.f32.mxu0 0.0
    %v229 = vand.u32 %v54, 4294901760
    %v230 = vsub.f32 %v54, %v229
    %v231 = vand.u32 %v230, 4294901760
    %v232 = vsub.f32 %v230, %v231
    %v233 = vand.u32 %v232, 4294901760
    %234 = vmatmul.mubr.f32.gmra.mrb[0].mxu0 %v233
    %v235 = vpop.f32.mrb[0].mxu0
    %v236 = vadd.f32 0.0, %v235
    %v237 = vpop.f32.mrb[0].mxu0
    %v238 = vadd.f32 0.0, %v237
    %239 = vmatprep.mubr.f32.mxu0 0.0
    %v240 = vand.u32 %v57, 4294901760
    %v241 = vsub.f32 %v57, %v240
    %v242 = vand.u32 %v241, 4294901760
    %v243 = vsub.f32 %v241, %v242
    %v244 = vand.u32 %v243, 4294901760
    %245 = vmatmul.mubr.f32.gmra.mrb[0].mxu0 %v244
    %v246 = vpop.f32.mrb[0].mxu0
    %v247 = vadd.f32 0.0, %v246
    %v248 = vpop.f32.mrb[0].mxu0
    %v249 = vadd.f32 0.0, %v248
    %250 = vmatprep.mubr.f32.mxu0 0.0
    %v251 = vand.u32 %v60, 4294901760
    %v252 = vsub.f32 %v60, %v251
    %v253 = vand.u32 %v252, 4294901760
    %v254 = vsub.f32 %v252, %v253
    %v255 = vand.u32 %v254, 4294901760
    %256 = vmatmul.mubr.f32.gmra.mrb[0].mxu0 %v255
    %v257 = vpop.f32.mrb[0].mxu0
    %v258 = vadd.f32 0.0, %v257
    %v259 = vpop.f32.mrb[0].mxu0
    %v260 = vadd.f32 0.0, %v259
    %261 = vmatprep.mubr.f32.mxu0 0.0
    %v262 = vand.u32 %v63, 4294901760
    %v263 = vsub.f32 %v63, %v262
    %v264 = vand.u32 %v263, 4294901760
    %v265 = vsub.f32 %v263, %v264
    %v266 = vand.u32 %v265, 4294901760
    %267 = vmatmul.mubr.f32.gmra.mrb[0].mxu0 %v266
    %v268 = vpop.f32.mrb[0].mxu0
    %v269 = vadd.f32 0.0, %v268
    %v270 = vpop.f32.mrb[0].mxu0
    %v271 = vadd.f32 0.0, %v270
    %272 = vmatprep.mubr.f32.mxu0 0.0
    %v273 = vand.u32 %v66, 4294901760
    %v274 = vsub.f32 %v66, %v273
    %v275 = vand.u32 %v274, 4294901760
    %v276 = vsub.f32 %v274, %v275
    %v277 = vand.u32 %v276, 4294901760
    %278 = vmatmul.mubr.f32.gmra.mrb[0].mxu0 %v277
    %v279 = vpop.f32.mrb[0].mxu0
    %v280 = vadd.f32 0.0, %v279
    %v281 = vpop.f32.mrb[0].mxu0
    %v282 = vadd.f32 0.0, %v281
    %283 = vmatprep.mubr.f32.mxu0 0.0
    %v284 = vand.u32 %v69, 4294901760
    %v285 = vsub.f32 %v69, %v284
    %v286 = vand.u32 %v285, 4294901760
    %v287 = vsub.f32 %v285, %v286
    %v288 = vand.u32 %v287, 4294901760
    %289 = vmatmul.mubr.f32.gmra.mrb[0].mxu0 %v288
    %v290 = vpop.f32.mrb[0].mxu0
    %v291 = vadd.f32 0.0, %v290
    %v292 = vpop.f32.mrb[0].mxu0
    %v293 = vadd.f32 0.0, %v292
    %294 = vmatprep.mubr.f32.mxu0 0.0
    %v295 = vand.u32 %v72, 4294901760
    %v296 = vsub.f32 %v72, %v295
    %v297 = vand.u32 %v296, 4294901760
    %v298 = vsub.f32 %v296, %v297
    %v299 = vand.u32 %v298, 4294901760
    %300 = vmatmul.mubr.f32.gmra.mrb[0].mxu0 %v299
    %v301 = vpop.f32.mrb[0].mxu0
    %v302 = vadd.f32 0.0, %v301
    %v303 = vpop.f32.mrb[0].mxu0
    %v304 = vadd.f32 0.0, %v303
    %305 = vmatprep.mubr.f32.mxu0 0.0
    %v306 = vand.u32 %v75, 4294901760
    %v307 = vsub.f32 %v75, %v306
    %v308 = vand.u32 %v307, 4294901760
    %v309 = vsub.f32 %v307, %v308
    %v310 = vand.u32 %v309, 4294901760
    %311 = vmatmul.mubr.f32.gmra.mrb[0].mxu0 %v310
    %v312 = vpop.f32.mrb[0].mxu0
    %v313 = vadd.f32 0.0, %v312
    %v314 = vpop.f32.mrb[0].mxu0
    %v315 = vadd.f32 0.0, %v314
    %316 = vmatprep.mubr.f32.mxu0 0.0
    %v317 = vand.u32 %v78, 4294901760
    %v318 = vsub.f32 %v78, %v317
    %v319 = vand.u32 %v318, 4294901760
    %v320 = vsub.f32 %v318, %v319
    %v321 = vand.u32 %v320, 4294901760
    %322 = vmatmul.mubr.f32.gmra.mrb[0].mxu0 %v321
    %v323 = vpop.f32.mrb[0].mxu0
    %v324 = vadd.f32 0.0, %v323
    %v325 = vpop.f32.mrb[0].mxu0
    %v326 = vadd.f32 0.0, %v325
    %327 = vdwg.mxu0
    %v328 = vand.u32 %v83, 4294901760
    %v329 = vsub.f32 %v83, %v328
    %v330 = vand.u32 %v329, 4294901760
    %v331 = vsub.f32 %v329, %v330
    %v332 = vand.u32 %v331, 4294901760
    %333 = vmatprep.subr.mxu0 %v332
    %v334 = vand.u32 %v81, 4294901760
    %v335 = vsub.f32 %v81, %v334
    %v336 = vand.u32 %v335, 4294901760
    %v337 = vsub.f32 %v335, %v336
    %v338 = vand.u32 %v337, 4294901760
    %339 = vmatpush1.msra.mxu0 %v338
    %340 = vmatprep.subr.mxu0 0.0
    %341 = vmatpush1.msra.mxu0 0.0
    %342 = vmatprep.subr.mxu0 0.0
    %343 = vmatpush1.msra.mxu0 0.0
    %344 = vmatprep.subr.mxu0 0.0
    %345 = vmatpush1.msra.mxu0 0.0
    %346 = vmatprep.subr.mxu0 0.0
    %347 = vmatpush1.msra.mxu0 0.0
    %348 = vmatprep.subr.mxu0 0.0
    %349 = vmatpush1.msra.mxu0 0.0
    %350 = vmatprep.subr.mxu0 0.0
    %351 = vmatpush1.msra.mxu0 0.0
    %352 = vmatprep.subr.mxu0 0.0
    %353 = vmatpush1.msra.mxu0 0.0
    %354 = vmatprep.subr.mxu0 0.0
    %355 = vmatpush1.msra.mxu0 0.0
    %356 = vmatprep.subr.mxu0 0.0
    %357 = vmatpush1.msra.mxu0 0.0
    %358 = vmatprep.subr.mxu0 0.0
    %359 = vmatpush1.msra.mxu0 0.0
    %360 = vmatprep.subr.mxu0 0.0
    %361 = vmatpush1.msra.mxu0 0.0
    %362 = vmatprep.subr.mxu0 0.0
    %363 = vmatpush1.msra.mxu0 0.0
    %364 = vmatprep.subr.mxu0 0.0
    %365 = vmatpush1.msra.mxu0 0.0
    %366 = vmatprep.subr.mxu0 0.0
    %367 = vmatpush1.msra.mxu0 0.0
    %368 = vmatprep.subr.mxu0 0.0
    %369 = vmatpush1.msra.mxu0 0.0
    %370 = vmatprep.subr.mxu0 0.0
    %371 = vmatpush1.msra.mxu0 0.0
    %372 = vmatprep.subr.mxu0 0.0
    %373 = vmatpush1.msra.mxu0 0.0
    %374 = vmatprep.subr.mxu0 0.0
    %375 = vmatpush1.msra.mxu0 0.0
    %376 = vmatprep.subr.mxu0 0.0
    %377 = vmatpush1.msra.mxu0 0.0
    %378 = vmatprep.subr.mxu0 0.0
    %379 = vmatpush1.msra.mxu0 0.0
    %380 = vmatprep.subr.mxu0 0.0
    %381 = vmatpush1.msra.mxu0 0.0
    %382 = vmatprep.subr.mxu0 0.0
    %383 = vmatpush1.msra.mxu0 0.0
    %384 = vmatprep.subr.mxu0 0.0
    %385 = vmatpush1.msra.mxu0 0.0
    %386 = vmatprep.subr.mxu0 0.0
    %387 = vmatpush1.msra.mxu0 0.0
    %388 = vmatprep.subr.mxu0 0.0
    %389 = vmatpush1.msra.mxu0 0.0
    %390 = vmatprep.subr.mxu0 0.0
    %391 = vmatpush1.msra.mxu0 0.0
    %392 = vmatprep.subr.mxu0 0.0
    %393 = vmatpush1.msra.mxu0 0.0
    %394 = vmatprep.subr.mxu0 0.0
    %395 = vmatpush1.msra.mxu0 0.0
    %396 = vmatprep.subr.mxu0 0.0
    %397 = vmatpush1.msra.mxu0 0.0
    %398 = vmatprep.subr.mxu0 0.0
    %399 = vmatpush1.msra.mxu0 0.0
    %400 = vmatprep.subr.mxu0 0.0
    %401 = vmatpush1.msra.mxu0 0.0
    %402 = vmatprep.mubr.f32.mxu0 0.0
    %v403 = vand.u32 %v33, 4294901760
    %404 = vmatmul.mubr.f32.gmra.mrb[0].mxu0 %v403
    %v405 = vpop.f32.mrb[0].mxu0
    %v406 = vadd.f32 %v159, %v405
    %v407 = vpop.f32.mrb[0].mxu0
    %v408 = vadd.f32 %v161, %v407
    %409 = vmatprep.mubr.f32.mxu0 0.0
    %v410 = vand.u32 %v36, 4294901760
    %411 = vmatmul.mubr.f32.gmra.mrb[0].mxu0 %v410
    %v412 = vpop.f32.mrb[0].mxu0
    %v413 = vadd.f32 %v170, %v412
    %v414 = vpop.f32.mrb[0].mxu0
    %v415 = vadd.f32 %v172, %v414
    %416 = vmatprep.mubr.f32.mxu0 0.0
    %v417 = vand.u32 %v39, 4294901760
    %418 = vmatmul.mubr.f32.gmra.mrb[0].mxu0 %v417
    %v419 = vpop.f32.mrb[0].mxu0
    %v420 = vadd.f32 %v181, %v419
    %v421 = vpop.f32.mrb[0].mxu0
    %v422 = vadd.f32 %v183, %v421
    %423 = vmatprep.mubr.f32.mxu0 0.0
    %v424 = vand.u32 %v42, 4294901760
    %425 = vmatmul.mubr.f32.gmra.mrb[0].mxu0 %v424
    %v426 = vpop.f32.mrb[0].mxu0
    %v427 = vadd.f32 %v192, %v426
    %v428 = vpop.f32.mrb[0].mxu0
    %v429 = vadd.f32 %v194, %v428
    %430 = vmatprep.mubr.f32.mxu0 0.0
    %v431 = vand.u32 %v45, 4294901760
    %432 = vmatmul.mubr.f32.gmra.mrb[0].mxu0 %v431
    %v433 = vpop.f32.mrb[0].mxu0
    %v434 = vadd.f32 %v203, %v433
    %v435 = vpop.f32.mrb[0].mxu0
    %v436 = vadd.f32 %v205, %v435
    %437 = vmatprep.mubr.f32.mxu0 0.0
    %v438 = vand.u32 %v48, 4294901760
    %439 = vmatmul.mubr.f32.gmra.mrb[0].mxu0 %v438
    %v440 = vpop.f32.mrb[0].mxu0
    %v441 = vadd.f32 %v214, %v440
    %v442 = vpop.f32.mrb[0].mxu0
    %v443 = vadd.f32 %v216, %v442
    %444 = vmatprep.mubr.f32.mxu0 0.0
    %v445 = vand.u32 %v51, 4294901760
    %446 = vmatmul.mubr.f32.gmra.mrb[0].mxu0 %v445
    %v447 = vpop.f32.mrb[0].mxu0
    %v448 = vadd.f32 %v225, %v447
    %v449 = vpop.f32.mrb[0].mxu0
    %v450 = vadd.f32 %v227, %v449
    %451 = vmatprep.mubr.f32.mxu0 0.0
    %v452 = vand.u32 %v54, 4294901760
    %453 = vmatmul.mubr.f32.gmra.mrb[0].mxu0 %v452
    %v454 = vpop.f32.mrb[0].mxu0
    %v455 = vadd.f32 %v236, %v454
    %v456 = vpop.f32.mrb[0].mxu0
    %v457 = vadd.f32 %v238, %v456
    %458 = vmatprep.mubr.f32.mxu0 0.0
    %v459 = vand.u32 %v57, 4294901760
    %460 = vmatmul.mubr.f32.gmra.mrb[0].mxu0 %v459
    %v461 = vpop.f32.mrb[0].mxu0
    %v462 = vadd.f32 %v247, %v461
    %v463 = vpop.f32.mrb[0].mxu0
    %v464 = vadd.f32 %v249, %v463
    %465 = vmatprep.mubr.f32.mxu0 0.0
    %v466 = vand.u32 %v60, 4294901760
    %467 = vmatmul.mubr.f32.gmra.mrb[0].mxu0 %v466
    %v468 = vpop.f32.mrb[0].mxu0
    %v469 = vadd.f32 %v258, %v468
    %v470 = vpop.f32.mrb[0].mxu0
    %v471 = vadd.f32 %v260, %v470
    %472 = vmatprep.mubr.f32.mxu0 0.0
    %v473 = vand.u32 %v63, 4294901760
    %474 = vmatmul.mubr.f32.gmra.mrb[0].mxu0 %v473
    %v475 = vpop.f32.mrb[0].mxu0
    %v476 = vadd.f32 %v269, %v475
    %v477 = vpop.f32.mrb[0].mxu0
    %v478 = vadd.f32 %v271, %v477
    %479 = vmatprep.mubr.f32.mxu0 0.0
    %v480 = vand.u32 %v66, 4294901760
    %481 = vmatmul.mubr.f32.gmra.mrb[0].mxu0 %v480
    %v482 = vpop.f32.mrb[0].mxu0
    %v483 = vadd.f32 %v280, %v482
    %v484 = vpop.f32.mrb[0].mxu0
    %v485 = vadd.f32 %v282, %v484
    %486 = vmatprep.mubr.f32.mxu0 0.0
    %v487 = vand.u32 %v69, 4294901760
    %488 = vmatmul.mubr.f32.gmra.mrb[0].mxu0 %v487
    %v489 = vpop.f32.mrb[0].mxu0
    %v490 = vadd.f32 %v291, %v489
    %v491 = vpop.f32.mrb[0].mxu0
    %v492 = vadd.f32 %v293, %v491
    %493 = vmatprep.mubr.f32.mxu0 0.0
    %v494 = vand.u32 %v72, 4294901760
    %495 = vmatmul.mubr.f32.gmra.mrb[0].mxu0 %v494
    %v496 = vpop.f32.mrb[0].mxu0
    %v497 = vadd.f32 %v302, %v496
    %v498 = vpop.f32.mrb[0].mxu0
    %v499 = vadd.f32 %v304, %v498
    %500 = vmatprep.mubr.f32.mxu0 0.0
    %v501 = vand.u32 %v75, 4294901760
    %502 = vmatmul.mubr.f32.gmra.mrb[0].mxu0 %v501
    %v503 = vpop.f32.mrb[0].mxu0
    %v504 = vadd.f32 %v313, %v503
    %v505 = vpop.f32.mrb[0].mxu0
    %v506 = vadd.f32 %v315, %v505
    %507 = vmatprep.mubr.f32.mxu0 0.0
    %v508 = vand.u32 %v78, 4294901760
    %509 = vmatmul.mubr.f32.gmra.mrb[0].mxu0 %v508
    %v510 = vpop.f32.mrb[0].mxu0
    %v511 = vadd.f32 %v324, %v510
    %v512 = vpop.f32.mrb[0].mxu0
    %v513 = vadd.f32 %v326, %v512
    %514 = vdwg.mxu0
    %v515 = vand.u32 %v83, 4294901760
    %v516 = vsub.f32 %v83, %v515
    %517 = vmatprep.subr.mxu0 %v516
    %v518 = vand.u32 %v81, 4294901760
    %v519 = vsub.f32 %v81, %v518
    %520 = vmatpush1.msra.mxu0 %v519
    %521 = vmatprep.subr.mxu0 0.0
    %522 = vmatpush1.msra.mxu0 0.0
    %523 = vmatprep.subr.mxu0 0.0
    %524 = vmatpush1.msra.mxu0 0.0
    %525 = vmatprep.subr.mxu0 0.0
    %526 = vmatpush1.msra.mxu0 0.0
    %527 = vmatprep.subr.mxu0 0.0
    %528 = vmatpush1.msra.mxu0 0.0
    %529 = vmatprep.subr.mxu0 0.0
    %530 = vmatpush1.msra.mxu0 0.0
    %531 = vmatprep.subr.mxu0 0.0
    %532 = vmatpush1.msra.mxu0 0.0
    %533 = vmatprep.subr.mxu0 0.0
    %534 = vmatpush1.msra.mxu0 0.0
    %535 = vmatprep.subr.mxu0 0.0
    %536 = vmatpush1.msra.mxu0 0.0
    %537 = vmatprep.subr.mxu0 0.0
    %538 = vmatpush1.msra.mxu0 0.0
    %539 = vmatprep.subr.mxu0 0.0
    %540 = vmatpush1.msra.mxu0 0.0
    %541 = vmatprep.subr.mxu0 0.0
    %542 = vmatpush1.msra.mxu0 0.0
    %543 = vmatprep.subr.mxu0 0.0
    %544 = vmatpush1.msra.mxu0 0.0
    %545 = vmatprep.subr.mxu0 0.0
    %546 = vmatpush1.msra.mxu0 0.0
    %547 = vmatprep.subr.mxu0 0.0
    %548 = vmatpush1.msra.mxu0 0.0
    %549 = vmatprep.subr.mxu0 0.0
    %550 = vmatpush1.msra.mxu0 0.0
    %551 = vmatprep.subr.mxu0 0.0
    %552 = vmatpush1.msra.mxu0 0.0
    %553 = vmatprep.subr.mxu0 0.0
    %554 = vmatpush1.msra.mxu0 0.0
    %555 = vmatprep.subr.mxu0 0.0
    %556 = vmatpush1.msra.mxu0 0.0
    %557 = vmatprep.subr.mxu0 0.0
    %558 = vmatpush1.msra.mxu0 0.0
    %559 = vmatprep.subr.mxu0 0.0
    %560 = vmatpush1.msra.mxu0 0.0
    %561 = vmatprep.subr.mxu0 0.0
    %562 = vmatpush1.msra.mxu0 0.0
    %563 = vmatprep.subr.mxu0 0.0
    %564 = vmatpush1.msra.mxu0 0.0
    %565 = vmatprep.subr.mxu0 0.0
    %566 = vmatpush1.msra.mxu0 0.0
    %567 = vmatprep.subr.mxu0 0.0
    %568 = vmatpush1.msra.mxu0 0.0
    %569 = vmatprep.subr.mxu0 0.0
    %570 = vmatpush1.msra.mxu0 0.0
    %571 = vmatprep.subr.mxu0 0.0
    %572 = vmatpush1.msra.mxu0 0.0
    %573 = vmatprep.subr.mxu0 0.0
    %574 = vmatpush1.msra.mxu0 0.0
    %575 = vmatprep.subr.mxu0 0.0
    %576 = vmatpush1.msra.mxu0 0.0
    %577 = vmatprep.subr.mxu0 0.0
    %578 = vmatpush1.msra.mxu0 0.0
    %579 = vmatprep.subr.mxu0 0.0
    %580 = vmatpush1.msra.mxu0 0.0
    %581 = vmatprep.subr.mxu0 0.0
    %582 = vmatpush1.msra.mxu0 0.0
    %583 = vmatprep.mubr.f32.mxu0 0.0
    %v584 = vand.u32 %v33, 4294901760
    %v585 = vsub.f32 %v33, %v584
    %586 = vmatmul.mubr.f32.gmra.mrb[0].mxu0 %v585
    %v587 = vpop.f32.mrb[0].mxu0
    %v588 = vadd.f32 %v406, %v587
    %v589 = vpop.f32.mrb[0].mxu0
    %v590 = vadd.f32 %v408, %v589
    %591 = vmatprep.mubr.f32.mxu0 0.0
    %v592 = vand.u32 %v36, 4294901760
    %v593 = vsub.f32 %v36, %v592
    %594 = vmatmul.mubr.f32.gmra.mrb[0].mxu0 %v593
    %v595 = vpop.f32.mrb[0].mxu0
    %v596 = vadd.f32 %v413, %v595
    %v597 = vpop.f32.mrb[0].mxu0
    %v598 = vadd.f32 %v415, %v597
    %599 = vmatprep.mubr.f32.mxu0 0.0
    %v600 = vand.u32 %v39, 4294901760
    %v601 = vsub.f32 %v39, %v600
    %602 = vmatmul.mubr.f32.gmra.mrb[0].mxu0 %v601
    %v603 = vpop.f32.mrb[0].mxu0
    %v604 = vadd.f32 %v420, %v603
    %v605 = vpop.f32.mrb[0].mxu0
    %v606 = vadd.f32 %v422, %v605
    %607 = vmatprep.mubr.f32.mxu0 0.0
    %v608 = vand.u32 %v42, 4294901760
    %v609 = vsub.f32 %v42, %v608
    %610 = vmatmul.mubr.f32.gmra.mrb[0].mxu0 %v609
    %v611 = vpop.f32.mrb[0].mxu0
    %v612 = vadd.f32 %v427, %v611
    %v613 = vpop.f32.mrb[0].mxu0
    %v614 = vadd.f32 %v429, %v613
    %615 = vmatprep.mubr.f32.mxu0 0.0
    %v616 = vand.u32 %v45, 4294901760
    %v617 = vsub.f32 %v45, %v616
    %618 = vmatmul.mubr.f32.gmra.mrb[0].mxu0 %v617
    %v619 = vpop.f32.mrb[0].mxu0
    %v620 = vadd.f32 %v434, %v619
    %v621 = vpop.f32.mrb[0].mxu0
    %v622 = vadd.f32 %v436, %v621
    %623 = vmatprep.mubr.f32.mxu0 0.0
    %v624 = vand.u32 %v48, 4294901760
    %v625 = vsub.f32 %v48, %v624
    %626 = vmatmul.mubr.f32.gmra.mrb[0].mxu0 %v625
    %v627 = vpop.f32.mrb[0].mxu0
    %v628 = vadd.f32 %v441, %v627
    %v629 = vpop.f32.mrb[0].mxu0
    %v630 = vadd.f32 %v443, %v629
    %631 = vmatprep.mubr.f32.mxu0 0.0
    %v632 = vand.u32 %v51, 4294901760
    %v633 = vsub.f32 %v51, %v632
    %634 = vmatmul.mubr.f32.gmra.mrb[0].mxu0 %v633
    %v635 = vpop.f32.mrb[0].mxu0
    %v636 = vadd.f32 %v448, %v635
    %v637 = vpop.f32.mrb[0].mxu0
    %v638 = vadd.f32 %v450, %v637
    %639 = vmatprep.mubr.f32.mxu0 0.0
    %v640 = vand.u32 %v54, 4294901760
    %v641 = vsub.f32 %v54, %v640
    %642 = vmatmul.mubr.f32.gmra.mrb[0].mxu0 %v641
    %v643 = vpop.f32.mrb[0].mxu0
    %v644 = vadd.f32 %v455, %v643
    %v645 = vpop.f32.mrb[0].mxu0
    %v646 = vadd.f32 %v457, %v645
    %647 = vmatprep.mubr.f32.mxu0 0.0
    %v648 = vand.u32 %v57, 4294901760
    %v649 = vsub.f32 %v57, %v648
    %650 = vmatmul.mubr.f32.gmra.mrb[0].mxu0 %v649
    %v651 = vpop.f32.mrb[0].mxu0
    %v652 = vadd.f32 %v462, %v651
    %v653 = vpop.f32.mrb[0].mxu0
    %v654 = vadd.f32 %v464, %v653
    %655 = vmatprep.mubr.f32.mxu0 0.0
    %v656 = vand.u32 %v60, 4294901760
    %v657 = vsub.f32 %v60, %v656
    %658 = vmatmul.mubr.f32.gmra.mrb[0].mxu0 %v657
    %v659 = vpop.f32.mrb[0].mxu0
    %v660 = vadd.f32 %v469, %v659
    %v661 = vpop.f32.mrb[0].mxu0
    %v662 = vadd.f32 %v471, %v661
    %663 = vmatprep.mubr.f32.mxu0 0.0
    %v664 = vand.u32 %v63, 4294901760
    %v665 = vsub.f32 %v63, %v664
    %666 = vmatmul.mubr.f32.gmra.mrb[0].mxu0 %v665
    %v667 = vpop.f32.mrb[0].mxu0
    %v668 = vadd.f32 %v476, %v667
    %v669 = vpop.f32.mrb[0].mxu0
    %v670 = vadd.f32 %v478, %v669
    %671 = vmatprep.mubr.f32.mxu0 0.0
    %v672 = vand.u32 %v66, 4294901760
    %v673 = vsub.f32 %v66, %v672
    %674 = vmatmul.mubr.f32.gmra.mrb[0].mxu0 %v673
    %v675 = vpop.f32.mrb[0].mxu0
    %v676 = vadd.f32 %v483, %v675
    %v677 = vpop.f32.mrb[0].mxu0
    %v678 = vadd.f32 %v485, %v677
    %679 = vmatprep.mubr.f32.mxu0 0.0
    %v680 = vand.u32 %v69, 4294901760
    %v681 = vsub.f32 %v69, %v680
    %682 = vmatmul.mubr.f32.gmra.mrb[0].mxu0 %v681
    %v683 = vpop.f32.mrb[0].mxu0
    %v684 = vadd.f32 %v490, %v683
    %v685 = vpop.f32.mrb[0].mxu0
    %v686 = vadd.f32 %v492, %v685
    %687 = vmatprep.mubr.f32.mxu0 0.0
    %v688 = vand.u32 %v72, 4294901760
    %v689 = vsub.f32 %v72, %v688
    %690 = vmatmul.mubr.f32.gmra.mrb[0].mxu0 %v689
    %v691 = vpop.f32.mrb[0].mxu0
    %v692 = vadd.f32 %v497, %v691
    %v693 = vpop.f32.mrb[0].mxu0
    %v694 = vadd.f32 %v499, %v693
    %695 = vmatprep.mubr.f32.mxu0 0.0
    %v696 = vand.u32 %v75, 4294901760
    %v697 = vsub.f32 %v75, %v696
    %698 = vmatmul.mubr.f32.gmra.mrb[0].mxu0 %v697
    %v699 = vpop.f32.mrb[0].mxu0
    %v700 = vadd.f32 %v504, %v699
    %v701 = vpop.f32.mrb[0].mxu0
    %v702 = vadd.f32 %v506, %v701
    %703 = vmatprep.mubr.f32.mxu0 0.0
    %v704 = vand.u32 %v78, 4294901760
    %v705 = vsub.f32 %v78, %v704
    %706 = vmatmul.mubr.f32.gmra.mrb[0].mxu0 %v705
    %v707 = vpop.f32.mrb[0].mxu0
    %v708 = vadd.f32 %v511, %v707
    %v709 = vpop.f32.mrb[0].mxu0
    %v710 = vadd.f32 %v513, %v709
    %711 = vdwg.mxu0
    %v712 = vand.u32 %v83, 4294901760
    %713 = vmatprep.subr.mxu0 %v712
    %v714 = vand.u32 %v81, 4294901760
    %715 = vmatpush1.msra.mxu0 %v714
    %716 = vmatprep.subr.mxu0 0.0
    %717 = vmatpush1.msra.mxu0 0.0
    %718 = vmatprep.subr.mxu0 0.0
    %719 = vmatpush1.msra.mxu0 0.0
    %720 = vmatprep.subr.mxu0 0.0
    %721 = vmatpush1.msra.mxu0 0.0
    %722 = vmatprep.subr.mxu0 0.0
    %723 = vmatpush1.msra.mxu0 0.0
    %724 = vmatprep.subr.mxu0 0.0
    %725 = vmatpush1.msra.mxu0 0.0
    %726 = vmatprep.subr.mxu0 0.0
    %727 = vmatpush1.msra.mxu0 0.0
    %728 = vmatprep.subr.mxu0 0.0
    %729 = vmatpush1.msra.mxu0 0.0
    %730 = vmatprep.subr.mxu0 0.0
    %731 = vmatpush1.msra.mxu0 0.0
    %732 = vmatprep.subr.mxu0 0.0
    %733 = vmatpush1.msra.mxu0 0.0
    %734 = vmatprep.subr.mxu0 0.0
    %735 = vmatpush1.msra.mxu0 0.0
    %736 = vmatprep.subr.mxu0 0.0
    %737 = vmatpush1.msra.mxu0 0.0
    %738 = vmatprep.subr.mxu0 0.0
    %739 = vmatpush1.msra.mxu0 0.0
    %740 = vmatprep.subr.mxu0 0.0
    %741 = vmatpush1.msra.mxu0 0.0
    %742 = vmatprep.subr.mxu0 0.0
    %743 = vmatpush1.msra.mxu0 0.0
    %744 = vmatprep.subr.mxu0 0.0
    %745 = vmatpush1.msra.mxu0 0.0
    %746 = vmatprep.subr.mxu0 0.0
    %747 = vmatpush1.msra.mxu0 0.0
    %748 = vmatprep.subr.mxu0 0.0
    %749 = vmatpush1.msra.mxu0 0.0
    %750 = vmatprep.subr.mxu0 0.0
    %751 = vmatpush1.msra.mxu0 0.0
    %752 = vmatprep.subr.mxu0 0.0
    %753 = vmatpush1.msra.mxu0 0.0
    %754 = vmatprep.subr.mxu0 0.0
    %755 = vmatpush1.msra.mxu0 0.0
    %756 = vmatprep.subr.mxu0 0.0
    %757 = vmatpush1.msra.mxu0 0.0
    %758 = vmatprep.subr.mxu0 0.0
    %759 = vmatpush1.msra.mxu0 0.0
    %760 = vmatprep.subr.mxu0 0.0
    %761 = vmatpush1.msra.mxu0 0.0
    %762 = vmatprep.subr.mxu0 0.0
    %763 = vmatpush1.msra.mxu0 0.0
    %764 = vmatprep.subr.mxu0 0.0
    %765 = vmatpush1.msra.mxu0 0.0
    %766 = vmatprep.subr.mxu0 0.0
    %767 = vmatpush1.msra.mxu0 0.0
    %768 = vmatprep.subr.mxu0 0.0
    %769 = vmatpush1.msra.mxu0 0.0
    %770 = vmatprep.subr.mxu0 0.0
    %771 = vmatpush1.msra.mxu0 0.0
    %772 = vmatprep.subr.mxu0 0.0
    %773 = vmatpush1.msra.mxu0 0.0
    %774 = vmatprep.subr.mxu0 0.0
    %775 = vmatpush1.msra.mxu0 0.0
    %776 = vmatprep.subr.mxu0 0.0
    %777 = vmatpush1.msra.mxu0 0.0
    %778 = vmatprep.mubr.f32.mxu0 0.0
    %v779 = vand.u32 %v33, 4294901760
    %v780 = vsub.f32 %v33, %v779
    %v781 = vand.u32 %v780, 4294901760
    %782 = vmatmul.mubr.f32.gmra.mrb[0].mxu0 %v781
    %v783 = vpop.f32.mrb[0].mxu0
    %v784 = vadd.f32 %v588, %v783
    %v785 = vpop.f32.mrb[0].mxu0
    %v786 = vadd.f32 %v590, %v785
    %787 = vmatprep.mubr.f32.mxu0 0.0
    %v788 = vand.u32 %v36, 4294901760
    %v789 = vsub.f32 %v36, %v788
    %v790 = vand.u32 %v789, 4294901760
    %791 = vmatmul.mubr.f32.gmra.mrb[0].mxu0 %v790
    %v792 = vpop.f32.mrb[0].mxu0
    %v793 = vadd.f32 %v596, %v792
    %v794 = vpop.f32.mrb[0].mxu0
    %v795 = vadd.f32 %v598, %v794
    %796 = vmatprep.mubr.f32.mxu0 0.0
    %v797 = vand.u32 %v39, 4294901760
    %v798 = vsub.f32 %v39, %v797
    %v799 = vand.u32 %v798, 4294901760
    %800 = vmatmul.mubr.f32.gmra.mrb[0].mxu0 %v799
    %v801 = vpop.f32.mrb[0].mxu0
    %v802 = vadd.f32 %v604, %v801
    %v803 = vpop.f32.mrb[0].mxu0
    %v804 = vadd.f32 %v606, %v803
    %805 = vmatprep.mubr.f32.mxu0 0.0
    %v806 = vand.u32 %v42, 4294901760
    %v807 = vsub.f32 %v42, %v806
    %v808 = vand.u32 %v807, 4294901760
    %809 = vmatmul.mubr.f32.gmra.mrb[0].mxu0 %v808
    %v810 = vpop.f32.mrb[0].mxu0
    %v811 = vadd.f32 %v612, %v810
    %v812 = vpop.f32.mrb[0].mxu0
    %v813 = vadd.f32 %v614, %v812
    %814 = vmatprep.mubr.f32.mxu0 0.0
    %v815 = vand.u32 %v45, 4294901760
    %v816 = vsub.f32 %v45, %v815
    %v817 = vand.u32 %v816, 4294901760
    %818 = vmatmul.mubr.f32.gmra.mrb[0].mxu0 %v817
    %v819 = vpop.f32.mrb[0].mxu0
    %v820 = vadd.f32 %v620, %v819
    %v821 = vpop.f32.mrb[0].mxu0
    %v822 = vadd.f32 %v622, %v821
    %823 = vmatprep.mubr.f32.mxu0 0.0
    %v824 = vand.u32 %v48, 4294901760
    %v825 = vsub.f32 %v48, %v824
    %v826 = vand.u32 %v825, 4294901760
    %827 = vmatmul.mubr.f32.gmra.mrb[0].mxu0 %v826
    %v828 = vpop.f32.mrb[0].mxu0
    %v829 = vadd.f32 %v628, %v828
    %v830 = vpop.f32.mrb[0].mxu0
    %v831 = vadd.f32 %v630, %v830
    %832 = vmatprep.mubr.f32.mxu0 0.0
    %v833 = vand.u32 %v51, 4294901760
    %v834 = vsub.f32 %v51, %v833
    %v835 = vand.u32 %v834, 4294901760
    %836 = vmatmul.mubr.f32.gmra.mrb[0].mxu0 %v835
    %v837 = vpop.f32.mrb[0].mxu0
    %v838 = vadd.f32 %v636, %v837
    %v839 = vpop.f32.mrb[0].mxu0
    %v840 = vadd.f32 %v638, %v839
    %841 = vmatprep.mubr.f32.mxu0 0.0
    %v842 = vand.u32 %v54, 4294901760
    %v843 = vsub.f32 %v54, %v842
    %v844 = vand.u32 %v843, 4294901760
    %845 = vmatmul.mubr.f32.gmra.mrb[0].mxu0 %v844
    %v846 = vpop.f32.mrb[0].mxu0
    %v847 = vadd.f32 %v644, %v846
    %v848 = vpop.f32.mrb[0].mxu0
    %v849 = vadd.f32 %v646, %v848
    %850 = vmatprep.mubr.f32.mxu0 0.0
    %v851 = vand.u32 %v57, 4294901760
    %v852 = vsub.f32 %v57, %v851
    %v853 = vand.u32 %v852, 4294901760
    %854 = vmatmul.mubr.f32.gmra.mrb[0].mxu0 %v853
    %v855 = vpop.f32.mrb[0].mxu0
    %v856 = vadd.f32 %v652, %v855
    %v857 = vpop.f32.mrb[0].mxu0
    %v858 = vadd.f32 %v654, %v857
    %859 = vmatprep.mubr.f32.mxu0 0.0
    %v860 = vand.u32 %v60, 4294901760
    %v861 = vsub.f32 %v60, %v860
    %v862 = vand.u32 %v861, 4294901760
    %863 = vmatmul.mubr.f32.gmra.mrb[0].mxu0 %v862
    %v864 = vpop.f32.mrb[0].mxu0
    %v865 = vadd.f32 %v660, %v864
    %v866 = vpop.f32.mrb[0].mxu0
    %v867 = vadd.f32 %v662, %v866
    %868 = vmatprep.mubr.f32.mxu0 0.0
    %v869 = vand.u32 %v63, 4294901760
    %v870 = vsub.f32 %v63, %v869
    %v871 = vand.u32 %v870, 4294901760
    %872 = vmatmul.mubr.f32.gmra.mrb[0].mxu0 %v871
    %v873 = vpop.f32.mrb[0].mxu0
    %v874 = vadd.f32 %v668, %v873
    %v875 = vpop.f32.mrb[0].mxu0
    %v876 = vadd.f32 %v670, %v875
    %877 = vmatprep.mubr.f32.mxu0 0.0
    %v878 = vand.u32 %v66, 4294901760
    %v879 = vsub.f32 %v66, %v878
    %v880 = vand.u32 %v879, 4294901760
    %881 = vmatmul.mubr.f32.gmra.mrb[0].mxu0 %v880
    %v882 = vpop.f32.mrb[0].mxu0
    %v883 = vadd.f32 %v676, %v882
    %v884 = vpop.f32.mrb[0].mxu0
    %v885 = vadd.f32 %v678, %v884
    %886 = vmatprep.mubr.f32.mxu0 0.0
    %v887 = vand.u32 %v69, 4294901760
    %v888 = vsub.f32 %v69, %v887
    %v889 = vand.u32 %v888, 4294901760
    %890 = vmatmul.mubr.f32.gmra.mrb[0].mxu0 %v889
    %v891 = vpop.f32.mrb[0].mxu0
    %v892 = vadd.f32 %v684, %v891
    %v893 = vpop.f32.mrb[0].mxu0
    %v894 = vadd.f32 %v686, %v893
    %895 = vmatprep.mubr.f32.mxu0 0.0
    %v896 = vand.u32 %v72, 4294901760
    %v897 = vsub.f32 %v72, %v896
    %v898 = vand.u32 %v897, 4294901760
    %899 = vmatmul.mubr.f32.gmra.mrb[0].mxu0 %v898
    %v900 = vpop.f32.mrb[0].mxu0
    %v901 = vadd.f32 %v692, %v900
    %v902 = vpop.f32.mrb[0].mxu0
    %v903 = vadd.f32 %v694, %v902
    %904 = vmatprep.mubr.f32.mxu0 0.0
    %v905 = vand.u32 %v75, 4294901760
    %v906 = vsub.f32 %v75, %v905
    %v907 = vand.u32 %v906, 4294901760
    %908 = vmatmul.mubr.f32.gmra.mrb[0].mxu0 %v907
    %v909 = vpop.f32.mrb[0].mxu0
    %v910 = vadd.f32 %v700, %v909
    %v911 = vpop.f32.mrb[0].mxu0
    %v912 = vadd.f32 %v702, %v911
    %913 = vmatprep.mubr.f32.mxu0 0.0
    %v914 = vand.u32 %v78, 4294901760
    %v915 = vsub.f32 %v78, %v914
    %v916 = vand.u32 %v915, 4294901760
    %917 = vmatmul.mubr.f32.gmra.mrb[0].mxu0 %v916
    %v918 = vpop.f32.mrb[0].mxu0
    %v919 = vadd.f32 %v708, %v918
    %v920 = vpop.f32.mrb[0].mxu0
    %v921 = vadd.f32 %v710, %v920
    %922 = vdwg.mxu0
    %v923 = vand.u32 %v83, 4294901760
    %v924 = vsub.f32 %v83, %v923
    %v925 = vand.u32 %v924, 4294901760
    %926 = vmatprep.subr.mxu0 %v925
    %v927 = vand.u32 %v81, 4294901760
    %v928 = vsub.f32 %v81, %v927
    %v929 = vand.u32 %v928, 4294901760
    %930 = vmatpush1.msra.mxu0 %v929
    %931 = vmatprep.subr.mxu0 0.0
    %932 = vmatpush1.msra.mxu0 0.0
    %933 = vmatprep.subr.mxu0 0.0
    %934 = vmatpush1.msra.mxu0 0.0
    %935 = vmatprep.subr.mxu0 0.0
    %936 = vmatpush1.msra.mxu0 0.0
    %937 = vmatprep.subr.mxu0 0.0
    %938 = vmatpush1.msra.mxu0 0.0
    %939 = vmatprep.subr.mxu0 0.0
    %940 = vmatpush1.msra.mxu0 0.0
    %941 = vmatprep.subr.mxu0 0.0
    %942 = vmatpush1.msra.mxu0 0.0
    %943 = vmatprep.subr.mxu0 0.0
    %944 = vmatpush1.msra.mxu0 0.0
    %945 = vmatprep.subr.mxu0 0.0
    %946 = vmatpush1.msra.mxu0 0.0
    %947 = vmatprep.subr.mxu0 0.0
    %948 = vmatpush1.msra.mxu0 0.0
    %949 = vmatprep.subr.mxu0 0.0
    %950 = vmatpush1.msra.mxu0 0.0
    %951 = vmatprep.subr.mxu0 0.0
    %952 = vmatpush1.msra.mxu0 0.0
    %953 = vmatprep.subr.mxu0 0.0
    %954 = vmatpush1.msra.mxu0 0.0
    %955 = vmatprep.subr.mxu0 0.0
    %956 = vmatpush1.msra.mxu0 0.0
    %957 = vmatprep.subr.mxu0 0.0
    %958 = vmatpush1.msra.mxu0 0.0
    %959 = vmatprep.subr.mxu0 0.0
    %960 = vmatpush1.msra.mxu0 0.0
    %961 = vmatprep.subr.mxu0 0.0
    %962 = vmatpush1.msra.mxu0 0.0
    %963 = vmatprep.subr.mxu0 0.0
    %964 = vmatpush1.msra.mxu0 0.0
    %965 = vmatprep.subr.mxu0 0.0
    %966 = vmatpush1.msra.mxu0 0.0
    %967 = vmatprep.subr.mxu0 0.0
    %968 = vmatpush1.msra.mxu0 0.0
    %969 = vmatprep.subr.mxu0 0.0
    %970 = vmatpush1.msra.mxu0 0.0
    %971 = vmatprep.subr.mxu0 0.0
    %972 = vmatpush1.msra.mxu0 0.0
    %973 = vmatprep.subr.mxu0 0.0
    %974 = vmatpush1.msra.mxu0 0.0
    %975 = vmatprep.subr.mxu0 0.0
    %976 = vmatpush1.msra.mxu0 0.0
    %977 = vmatprep.subr.mxu0 0.0
    %978 = vmatpush1.msra.mxu0 0.0
    %979 = vmatprep.subr.mxu0 0.0
    %980 = vmatpush1.msra.mxu0 0.0
    %981 = vmatprep.subr.mxu0 0.0
    %982 = vmatpush1.msra.mxu0 0.0
    %983 = vmatprep.subr.mxu0 0.0
    %984 = vmatpush1.msra.mxu0 0.0
    %985 = vmatprep.subr.mxu0 0.0
    %986 = vmatpush1.msra.mxu0 0.0
    %987 = vmatprep.subr.mxu0 0.0
    %988 = vmatpush1.msra.mxu0 0.0
    %989 = vmatprep.subr.mxu0 0.0
    %990 = vmatpush1.msra.mxu0 0.0
    %991 = vmatprep.subr.mxu0 0.0
    %992 = vmatpush1.msra.mxu0 0.0
    %993 = vmatprep.mubr.f32.mxu0 0.0
    %v994 = vand.u32 %v33, 4294901760
    %995 = vmatmul.mubr.f32.gmra.mrb[0].mxu0 %v994
    %v996 = vpop.f32.mrb[0].mxu0
    %v997 = vadd.f32 %v784, %v996
    %v998 = vpop.f32.mrb[0].mxu0
    %v999 = vadd.f32 %v786, %v998
    %1000 = vmatprep.mubr.f32.mxu0 0.0
    %v1001 = vand.u32 %v36, 4294901760
    %1002 = vmatmul.mubr.f32.gmra.mrb[0].mxu0 %v1001
    %v1003 = vpop.f32.mrb[0].mxu0
    %v1004 = vadd.f32 %v793, %v1003
    %v1005 = vpop.f32.mrb[0].mxu0
    %v1006 = vadd.f32 %v795, %v1005
    %1007 = vmatprep.mubr.f32.mxu0 0.0
    %v1008 = vand.u32 %v39, 4294901760
    %1009 = vmatmul.mubr.f32.gmra.mrb[0].mxu0 %v1008
    %v1010 = vpop.f32.mrb[0].mxu0
    %v1011 = vadd.f32 %v802, %v1010
    %v1012 = vpop.f32.mrb[0].mxu0
    %v1013 = vadd.f32 %v804, %v1012
    %1014 = vmatprep.mubr.f32.mxu0 0.0
    %v1015 = vand.u32 %v42, 4294901760
    %1016 = vmatmul.mubr.f32.gmra.mrb[0].mxu0 %v1015
    %v1017 = vpop.f32.mrb[0].mxu0
    %v1018 = vadd.f32 %v811, %v1017
    %v1019 = vpop.f32.mrb[0].mxu0
    %v1020 = vadd.f32 %v813, %v1019
    %1021 = vmatprep.mubr.f32.mxu0 0.0
    %v1022 = vand.u32 %v45, 4294901760
    %1023 = vmatmul.mubr.f32.gmra.mrb[0].mxu0 %v1022
    %v1024 = vpop.f32.mrb[0].mxu0
    %v1025 = vadd.f32 %v820, %v1024
    %v1026 = vpop.f32.mrb[0].mxu0
    %v1027 = vadd.f32 %v822, %v1026
    %1028 = vmatprep.mubr.f32.mxu0 0.0
    %v1029 = vand.u32 %v48, 4294901760
    %1030 = vmatmul.mubr.f32.gmra.mrb[0].mxu0 %v1029
    %v1031 = vpop.f32.mrb[0].mxu0
    %v1032 = vadd.f32 %v829, %v1031
    %v1033 = vpop.f32.mrb[0].mxu0
    %v1034 = vadd.f32 %v831, %v1033
    %1035 = vmatprep.mubr.f32.mxu0 0.0
    %v1036 = vand.u32 %v51, 4294901760
    %1037 = vmatmul.mubr.f32.gmra.mrb[0].mxu0 %v1036
    %v1038 = vpop.f32.mrb[0].mxu0
    %v1039 = vadd.f32 %v838, %v1038
    %v1040 = vpop.f32.mrb[0].mxu0
    %v1041 = vadd.f32 %v840, %v1040
    %1042 = vmatprep.mubr.f32.mxu0 0.0
    %v1043 = vand.u32 %v54, 4294901760
    %1044 = vmatmul.mubr.f32.gmra.mrb[0].mxu0 %v1043
    %v1045 = vpop.f32.mrb[0].mxu0
    %v1046 = vadd.f32 %v847, %v1045
    %v1047 = vpop.f32.mrb[0].mxu0
    %v1048 = vadd.f32 %v849, %v1047
    %1049 = vmatprep.mubr.f32.mxu0 0.0
    %v1050 = vand.u32 %v57, 4294901760
    %1051 = vmatmul.mubr.f32.gmra.mrb[0].mxu0 %v1050
    %v1052 = vpop.f32.mrb[0].mxu0
    %v1053 = vadd.f32 %v856, %v1052
    %v1054 = vpop.f32.mrb[0].mxu0
    %v1055 = vadd.f32 %v858, %v1054
    %1056 = vmatprep.mubr.f32.mxu0 0.0
    %v1057 = vand.u32 %v60, 4294901760
    %1058 = vmatmul.mubr.f32.gmra.mrb[0].mxu0 %v1057
    %v1059 = vpop.f32.mrb[0].mxu0
    %v1060 = vadd.f32 %v865, %v1059
    %v1061 = vpop.f32.mrb[0].mxu0
    %v1062 = vadd.f32 %v867, %v1061
    %1063 = vmatprep.mubr.f32.mxu0 0.0
    %v1064 = vand.u32 %v63, 4294901760
    %1065 = vmatmul.mubr.f32.gmra.mrb[0].mxu0 %v1064
    %v1066 = vpop.f32.mrb[0].mxu0
    %v1067 = vadd.f32 %v874, %v1066
    %v1068 = vpop.f32.mrb[0].mxu0
    %v1069 = vadd.f32 %v876, %v1068
    %1070 = vmatprep.mubr.f32.mxu0 0.0
    %v1071 = vand.u32 %v66, 4294901760
    %1072 = vmatmul.mubr.f32.gmra.mrb[0].mxu0 %v1071
    %v1073 = vpop.f32.mrb[0].mxu0
    %v1074 = vadd.f32 %v883, %v1073
    %v1075 = vpop.f32.mrb[0].mxu0
    %v1076 = vadd.f32 %v885, %v1075
    %1077 = vmatprep.mubr.f32.mxu0 0.0
    %v1078 = vand.u32 %v69, 4294901760
    %1079 = vmatmul.mubr.f32.gmra.mrb[0].mxu0 %v1078
    %v1080 = vpop.f32.mrb[0].mxu0
    %v1081 = vadd.f32 %v892, %v1080
    %v1082 = vpop.f32.mrb[0].mxu0
    %v1083 = vadd.f32 %v894, %v1082
    %1084 = vmatprep.mubr.f32.mxu0 0.0
    %v1085 = vand.u32 %v72, 4294901760
    %1086 = vmatmul.mubr.f32.gmra.mrb[0].mxu0 %v1085
    %v1087 = vpop.f32.mrb[0].mxu0
    %v1088 = vadd.f32 %v901, %v1087
    %v1089 = vpop.f32.mrb[0].mxu0
    %v1090 = vadd.f32 %v903, %v1089
    %1091 = vmatprep.mubr.f32.mxu0 0.0
    %v1092 = vand.u32 %v75, 4294901760
    %1093 = vmatmul.mubr.f32.gmra.mrb[0].mxu0 %v1092
    %v1094 = vpop.f32.mrb[0].mxu0
    %v1095 = vadd.f32 %v910, %v1094
    %v1096 = vpop.f32.mrb[0].mxu0
    %v1097 = vadd.f32 %v912, %v1096
    %1098 = vmatprep.mubr.f32.mxu0 0.0
    %v1099 = vand.u32 %v78, 4294901760
    %1100 = vmatmul.mubr.f32.gmra.mrb[0].mxu0 %v1099
    %v1101 = vpop.f32.mrb[0].mxu0
    %v1102 = vadd.f32 %v919, %v1101
    %v1103 = vpop.f32.mrb[0].mxu0
    %v1104 = vadd.f32 %v921, %v1103
    %1105 = vdwg.mxu0
    %v1106 = vand.u32 %v83, 4294901760
    %1107 = vmatprep.subr.mxu0 %v1106
    %v1108 = vand.u32 %v81, 4294901760
    %1109 = vmatpush1.msra.mxu0 %v1108
    %1110 = vmatprep.subr.mxu0 0.0
    %1111 = vmatpush1.msra.mxu0 0.0
    %1112 = vmatprep.subr.mxu0 0.0
    %1113 = vmatpush1.msra.mxu0 0.0
    %1114 = vmatprep.subr.mxu0 0.0
    %1115 = vmatpush1.msra.mxu0 0.0
    %1116 = vmatprep.subr.mxu0 0.0
    %1117 = vmatpush1.msra.mxu0 0.0
    %1118 = vmatprep.subr.mxu0 0.0
    %1119 = vmatpush1.msra.mxu0 0.0
    %1120 = vmatprep.subr.mxu0 0.0
    %1121 = vmatpush1.msra.mxu0 0.0
    %1122 = vmatprep.subr.mxu0 0.0
    %1123 = vmatpush1.msra.mxu0 0.0
    %1124 = vmatprep.subr.mxu0 0.0
    %1125 = vmatpush1.msra.mxu0 0.0
    %1126 = vmatprep.subr.mxu0 0.0
    %1127 = vmatpush1.msra.mxu0 0.0
    %1128 = vmatprep.subr.mxu0 0.0
    %1129 = vmatpush1.msra.mxu0 0.0
    %1130 = vmatprep.subr.mxu0 0.0
    %1131 = vmatpush1.msra.mxu0 0.0
    %1132 = vmatprep.subr.mxu0 0.0
    %1133 = vmatpush1.msra.mxu0 0.0
    %1134 = vmatprep.subr.mxu0 0.0
    %1135 = vmatpush1.msra.mxu0 0.0
    %1136 = vmatprep.subr.mxu0 0.0
    %1137 = vmatpush1.msra.mxu0 0.0
    %1138 = vmatprep.subr.mxu0 0.0
    %1139 = vmatpush1.msra.mxu0 0.0
    %1140 = vmatprep.subr.mxu0 0.0
    %1141 = vmatpush1.msra.mxu0 0.0
    %1142 = vmatprep.subr.mxu0 0.0
    %1143 = vmatpush1.msra.mxu0 0.0
    %1144 = vmatprep.subr.mxu0 0.0
    %1145 = vmatpush1.msra.mxu0 0.0
    %1146 = vmatprep.subr.mxu0 0.0
    %1147 = vmatpush1.msra.mxu0 0.0
    %1148 = vmatprep.subr.mxu0 0.0
    %1149 = vmatpush1.msra.mxu0 0.0
    %1150 = vmatprep.subr.mxu0 0.0
    %1151 = vmatpush1.msra.mxu0 0.0
    %1152 = vmatprep.subr.mxu0 0.0
    %1153 = vmatpush1.msra.mxu0 0.0
    %1154 = vmatprep.subr.mxu0 0.0
    %1155 = vmatpush1.msra.mxu0 0.0
    %1156 = vmatprep.subr.mxu0 0.0
    %1157 = vmatpush1.msra.mxu0 0.0
    %1158 = vmatprep.subr.mxu0 0.0
    %1159 = vmatpush1.msra.mxu0 0.0
    %1160 = vmatprep.subr.mxu0 0.0
    %1161 = vmatpush1.msra.mxu0 0.0
    %1162 = vmatprep.subr.mxu0 0.0
    %1163 = vmatpush1.msra.mxu0 0.0
    %1164 = vmatprep.subr.mxu0 0.0
    %1165 = vmatpush1.msra.mxu0 0.0
    %1166 = vmatprep.subr.mxu0 0.0
    %1167 = vmatpush1.msra.mxu0 0.0
    %1168 = vmatprep.subr.mxu0 0.0
    %1169 = vmatpush1.msra.mxu0 0.0
    %1170 = vmatprep.subr.mxu0 0.0
    %1171 = vmatpush1.msra.mxu0 0.0
    %1172 = vmatprep.mubr.f32.mxu0 0.0
    %v1173 = vand.u32 %v33, 4294901760
    %1174 = vmatmul.mubr.f32.gmra.mrb[0].mxu0 %v1173
    %v1175 = vpop.f32.mrb[0].mxu0
    %v1176 = vadd.f32 %v997, %v1175
    %v1177 = vpop.f32.mrb[0].mxu0
    %v1178 = vadd.f32 %v999, %v1177
    %1179 = vmatprep.mubr.f32.mxu0 0.0
    %v1180 = vand.u32 %v36, 4294901760
    %1181 = vmatmul.mubr.f32.gmra.mrb[0].mxu0 %v1180
    %v1182 = vpop.f32.mrb[0].mxu0
    %v1183 = vadd.f32 %v1004, %v1182
    %v1184 = vpop.f32.mrb[0].mxu0
    %v1185 = vadd.f32 %v1006, %v1184
    %1186 = vmatprep.mubr.f32.mxu0 0.0
    %v1187 = vand.u32 %v39, 4294901760
    %1188 = vmatmul.mubr.f32.gmra.mrb[0].mxu0 %v1187
    %v1189 = vpop.f32.mrb[0].mxu0
    %v1190 = vadd.f32 %v1011, %v1189
    %v1191 = vpop.f32.mrb[0].mxu0
    %v1192 = vadd.f32 %v1013, %v1191
    %1193 = vmatprep.mubr.f32.mxu0 0.0
    %v1194 = vand.u32 %v42, 4294901760
    %1195 = vmatmul.mubr.f32.gmra.mrb[0].mxu0 %v1194
    %v1196 = vpop.f32.mrb[0].mxu0
    %v1197 = vadd.f32 %v1018, %v1196
    %v1198 = vpop.f32.mrb[0].mxu0
    %v1199 = vadd.f32 %v1020, %v1198
    %1200 = vmatprep.mubr.f32.mxu0 0.0
    %v1201 = vand.u32 %v45, 4294901760
    %1202 = vmatmul.mubr.f32.gmra.mrb[0].mxu0 %v1201
    %v1203 = vpop.f32.mrb[0].mxu0
    %v1204 = vadd.f32 %v1025, %v1203
    %v1205 = vpop.f32.mrb[0].mxu0
    %v1206 = vadd.f32 %v1027, %v1205
    %1207 = vmatprep.mubr.f32.mxu0 0.0
    %v1208 = vand.u32 %v48, 4294901760
    %1209 = vmatmul.mubr.f32.gmra.mrb[0].mxu0 %v1208
    %v1210 = vpop.f32.mrb[0].mxu0
    %v1211 = vadd.f32 %v1032, %v1210
    %v1212 = vpop.f32.mrb[0].mxu0
    %v1213 = vadd.f32 %v1034, %v1212
    %1214 = vmatprep.mubr.f32.mxu0 0.0
    %v1215 = vand.u32 %v51, 4294901760
    %1216 = vmatmul.mubr.f32.gmra.mrb[0].mxu0 %v1215
    %v1217 = vpop.f32.mrb[0].mxu0
    %v1218 = vadd.f32 %v1039, %v1217
    %v1219 = vpop.f32.mrb[0].mxu0
    %v1220 = vadd.f32 %v1041, %v1219
    %1221 = vmatprep.mubr.f32.mxu0 0.0
    %v1222 = vand.u32 %v54, 4294901760
    %1223 = vmatmul.mubr.f32.gmra.mrb[0].mxu0 %v1222
    %v1224 = vpop.f32.mrb[0].mxu0
    %v1225 = vadd.f32 %v1046, %v1224
    %v1226 = vpop.f32.mrb[0].mxu0
    %v1227 = vadd.f32 %v1048, %v1226
    %1228 = vmatprep.mubr.f32.mxu0 0.0
    %v1229 = vand.u32 %v57, 4294901760
    %1230 = vmatmul.mubr.f32.gmra.mrb[0].mxu0 %v1229
    %v1231 = vpop.f32.mrb[0].mxu0
    %v1232 = vadd.f32 %v1053, %v1231
    %v1233 = vpop.f32.mrb[0].mxu0
    %v1234 = vadd.f32 %v1055, %v1233
    %1235 = vmatprep.mubr.f32.mxu0 0.0
    %v1236 = vand.u32 %v60, 4294901760
    %1237 = vmatmul.mubr.f32.gmra.mrb[0].mxu0 %v1236
    %v1238 = vpop.f32.mrb[0].mxu0
    %v1239 = vadd.f32 %v1060, %v1238
    %v1240 = vpop.f32.mrb[0].mxu0
    %v1241 = vadd.f32 %v1062, %v1240
    %1242 = vmatprep.mubr.f32.mxu0 0.0
    %v1243 = vand.u32 %v63, 4294901760
    %1244 = vmatmul.mubr.f32.gmra.mrb[0].mxu0 %v1243
    %v1245 = vpop.f32.mrb[0].mxu0
    %v1246 = vadd.f32 %v1067, %v1245
    %v1247 = vpop.f32.mrb[0].mxu0
    %v1248 = vadd.f32 %v1069, %v1247
    %1249 = vmatprep.mubr.f32.mxu0 0.0
    %v1250 = vand.u32 %v66, 4294901760
    %1251 = vmatmul.mubr.f32.gmra.mrb[0].mxu0 %v1250
    %v1252 = vpop.f32.mrb[0].mxu0
    %v1253 = vadd.f32 %v1074, %v1252
    %v1254 = vpop.f32.mrb[0].mxu0
    %v1255 = vadd.f32 %v1076, %v1254
    %1256 = vmatprep.mubr.f32.mxu0 0.0
    %v1257 = vand.u32 %v69, 4294901760
    %1258 = vmatmul.mubr.f32.gmra.mrb[0].mxu0 %v1257
    %v1259 = vpop.f32.mrb[0].mxu0
    %v1260 = vadd.f32 %v1081, %v1259
    %v1261 = vpop.f32.mrb[0].mxu0
    %v1262 = vadd.f32 %v1083, %v1261
    %1263 = vmatprep.mubr.f32.mxu0 0.0
    %v1264 = vand.u32 %v72, 4294901760
    %1265 = vmatmul.mubr.f32.gmra.mrb[0].mxu0 %v1264
    %v1266 = vpop.f32.mrb[0].mxu0
    %v1267 = vadd.f32 %v1088, %v1266
    %v1268 = vpop.f32.mrb[0].mxu0
    %v1269 = vadd.f32 %v1090, %v1268
    %1270 = vmatprep.mubr.f32.mxu0 0.0
    %v1271 = vand.u32 %v75, 4294901760
    %1272 = vmatmul.mubr.f32.gmra.mrb[0].mxu0 %v1271
    %v1273 = vpop.f32.mrb[0].mxu0
    %v1274 = vadd.f32 %v1095, %v1273
    %v1275 = vpop.f32.mrb[0].mxu0
    %v1276 = vadd.f32 %v1097, %v1275
    %1277 = vmatprep.mubr.f32.mxu0 0.0
    %v1278 = vand.u32 %v78, 4294901760
    %1279 = vmatmul.mubr.f32.gmra.mrb[0].mxu0 %v1278
    %v1280 = vpop.f32.mrb[0].mxu0
    %v1281 = vadd.f32 %v1102, %v1280
    %v1282 = vpop.f32.mrb[0].mxu0
    %v1283 = vadd.f32 %v1104, %v1282
    %1284 = vdwg.mxu0
    %v1285 = vround.ne.pseudo %v1176
    %v1286 = vround.ne.pseudo %v1178
    %v1287 = vround.ne.pseudo %v1183
    %v1288 = vround.ne.pseudo %v1185
    %v1289 = vround.ne.pseudo %v1190
    %v1290 = vround.ne.pseudo %v1192
    %v1291 = vround.ne.pseudo %v1197
    %v1292 = vround.ne.pseudo %v1199
    %v1293 = vround.ne.pseudo %v1204
    %v1294 = vround.ne.pseudo %v1206
    %v1295 = vround.ne.pseudo %v1211
    %v1296 = vround.ne.pseudo %v1213
    %v1297 = vround.ne.pseudo %v1218
    %v1298 = vround.ne.pseudo %v1220
    %v1299 = vround.ne.pseudo %v1225
    %v1300 = vround.ne.pseudo %v1227
    %v1301 = vround.ne.pseudo %v1232
    %v1302 = vround.ne.pseudo %v1234
    %v1303 = vround.ne.pseudo %v1239
    %v1304 = vround.ne.pseudo %v1241
    %v1305 = vround.ne.pseudo %v1246
    %v1306 = vround.ne.pseudo %v1248
    %v1307 = vround.ne.pseudo %v1253
    %v1308 = vround.ne.pseudo %v1255
    %v1309 = vround.ne.pseudo %v1260
    %v1310 = vround.ne.pseudo %v1262
    %v1311 = vround.ne.pseudo %v1267
    %v1312 = vround.ne.pseudo %v1269
    %v1313 = vround.ne.pseudo %v1274
    %v1314 = vround.ne.pseudo %v1276
    %v1315 = vround.ne.pseudo %v1281
    %v1316 = vround.ne.pseudo %v1283
    %v1317 = vsub.f32 %v1176, %v1285
    %v1318 = vsub.f32 %v1178, %v1286
    %v1319 = vsub.f32 %v1183, %v1287
    %v1320 = vsub.f32 %v1185, %v1288
    %v1321 = vsub.f32 %v1190, %v1289
    %v1322 = vsub.f32 %v1192, %v1290
    %v1323 = vsub.f32 %v1197, %v1291
    %v1324 = vsub.f32 %v1199, %v1292
    %v1325 = vsub.f32 %v1204, %v1293
    %v1326 = vsub.f32 %v1206, %v1294
    %v1327 = vsub.f32 %v1211, %v1295
    %v1328 = vsub.f32 %v1213, %v1296
    %v1329 = vsub.f32 %v1218, %v1297
    %v1330 = vsub.f32 %v1220, %v1298
    %v1331 = vsub.f32 %v1225, %v1299
    %v1332 = vsub.f32 %v1227, %v1300
    %v1333 = vsub.f32 %v1232, %v1301
    %v1334 = vsub.f32 %v1234, %v1302
    %v1335 = vsub.f32 %v1239, %v1303
    %v1336 = vsub.f32 %v1241, %v1304
    %v1337 = vsub.f32 %v1246, %v1305
    %v1338 = vsub.f32 %v1248, %v1306
    %v1339 = vsub.f32 %v1253, %v1307
    %v1340 = vsub.f32 %v1255, %v1308
    %v1341 = vsub.f32 %v1260, %v1309
    %v1342 = vsub.f32 %v1262, %v1310
    %v1343 = vsub.f32 %v1267, %v1311
    %v1344 = vsub.f32 %v1269, %v1312
    %v1345 = vsub.f32 %v1274, %v1313
    %v1346 = vsub.f32 %v1276, %v1314
    %v1347 = vsub.f32 %v1281, %v1315
    %v1348 = vsub.f32 %v1283, %v1316
    %v1349 = vmul.f32 %v1317, 6.2831855
    %v1350 = vmul.f32 %v1318, 6.2831855
    %v1351 = vmul.f32 %v1319, 6.2831855
    %v1352 = vmul.f32 %v1320, 6.2831855
    %v1353 = vmul.f32 %v1321, 6.2831855
    %v1354 = vmul.f32 %v1322, 6.2831855
    %v1355 = vmul.f32 %v1323, 6.2831855
    %v1356 = vmul.f32 %v1324, 6.2831855
    %v1357 = vmul.f32 %v1325, 6.2831855
    %v1358 = vmul.f32 %v1326, 6.2831855
    %v1359 = vmul.f32 %v1327, 6.2831855
    %v1360 = vmul.f32 %v1328, 6.2831855
    %v1361 = vmul.f32 %v1329, 6.2831855
    %v1362 = vmul.f32 %v1330, 6.2831855
    %v1363 = vmul.f32 %v1331, 6.2831855
    %v1364 = vmul.f32 %v1332, 6.2831855
    %v1365 = vmul.f32 %v1333, 6.2831855
    %v1366 = vmul.f32 %v1334, 6.2831855
    %v1367 = vmul.f32 %v1335, 6.2831855
    %v1368 = vmul.f32 %v1336, 6.2831855
    %v1369 = vmul.f32 %v1337, 6.2831855
    %v1370 = vmul.f32 %v1338, 6.2831855
    %v1371 = vmul.f32 %v1339, 6.2831855
    %v1372 = vmul.f32 %v1340, 6.2831855
    %v1373 = vmul.f32 %v1341, 6.2831855
    %v1374 = vmul.f32 %v1342, 6.2831855
    %v1375 = vmul.f32 %v1343, 6.2831855
    %v1376 = vmul.f32 %v1344, 6.2831855
    %v1377 = vmul.f32 %v1345, 6.2831855
    %v1378 = vmul.f32 %v1346, 6.2831855
    %v1379 = vmul.f32 %v1347, 6.2831855
    %v1380 = vmul.f32 %v1348, 6.2831855
    %v1381 = vmul.f32 %v1349, %v1349
    %v1382 = vmul.f32 %v1350, %v1350
    %v1383 = vmul.f32 %v1351, %v1351
    %v1384 = vmul.f32 %v1352, %v1352
    %v1385 = vmul.f32 %v1353, %v1353
    %v1386 = vmul.f32 %v1354, %v1354
    %v1387 = vmul.f32 %v1355, %v1355
    %v1388 = vmul.f32 %v1356, %v1356
    %v1389 = vmul.f32 %v1357, %v1357
    %v1390 = vmul.f32 %v1358, %v1358
    %v1391 = vmul.f32 %v1359, %v1359
    %v1392 = vmul.f32 %v1360, %v1360
    %v1393 = vmul.f32 %v1361, %v1361
    %v1394 = vmul.f32 %v1362, %v1362
    %v1395 = vmul.f32 %v1363, %v1363
    %v1396 = vmul.f32 %v1364, %v1364
    %v1397 = vmul.f32 %v1365, %v1365
    %v1398 = vmul.f32 %v1366, %v1366
    %v1399 = vmul.f32 %v1367, %v1367
    %v1400 = vmul.f32 %v1368, %v1368
    %v1401 = vmul.f32 %v1369, %v1369
    %v1402 = vmul.f32 %v1370, %v1370
    %v1403 = vmul.f32 %v1371, %v1371
    %v1404 = vmul.f32 %v1372, %v1372
    %v1405 = vmul.f32 %v1373, %v1373
    %v1406 = vmul.f32 %v1374, %v1374
    %v1407 = vmul.f32 %v1375, %v1375
    %v1408 = vmul.f32 %v1376, %v1376
    %v1409 = vmul.f32 %v1377, %v1377
    %v1410 = vmul.f32 %v1378, %v1378
    %v1411 = vmul.f32 %v1379, %v1379
    %v1412 = vmul.f32 %v1380, %v1380
    %v1413 = vmul.f32 %v1381, -7.6471636e-13
    %v1414 = vmul.f32 %v1382, -7.6471636e-13
    %v1415 = vmul.f32 %v1383, -7.6471636e-13
    %v1416 = vmul.f32 %v1384, -7.6471636e-13
    %v1417 = vmul.f32 %v1385, -7.6471636e-13
    %v1418 = vmul.f32 %v1386, -7.6471636e-13
    %v1419 = vmul.f32 %v1387, -7.6471636e-13
    %v1420 = vmul.f32 %v1388, -7.6471636e-13
    %v1421 = vmul.f32 %v1389, -7.6471636e-13
    %v1422 = vmul.f32 %v1390, -7.6471636e-13
    %v1423 = vmul.f32 %v1391, -7.6471636e-13
    %v1424 = vmul.f32 %v1392, -7.6471636e-13
    %v1425 = vmul.f32 %v1393, -7.6471636e-13
    %v1426 = vmul.f32 %v1394, -7.6471636e-13
    %v1427 = vmul.f32 %v1395, -7.6471636e-13
    %v1428 = vmul.f32 %v1396, -7.6471636e-13
    %v1429 = vmul.f32 %v1397, -7.6471636e-13
    %v1430 = vmul.f32 %v1398, -7.6471636e-13
    %v1431 = vmul.f32 %v1399, -7.6471636e-13
    %v1432 = vmul.f32 %v1400, -7.6471636e-13
    %v1433 = vmul.f32 %v1401, -7.6471636e-13
    %v1434 = vmul.f32 %v1402, -7.6471636e-13
    %v1435 = vmul.f32 %v1403, -7.6471636e-13
    %v1436 = vmul.f32 %v1404, -7.6471636e-13
    %v1437 = vmul.f32 %v1405, -7.6471636e-13
    %v1438 = vmul.f32 %v1406, -7.6471636e-13
    %v1439 = vmul.f32 %v1407, -7.6471636e-13
    %v1440 = vmul.f32 %v1408, -7.6471636e-13
    %v1441 = vmul.f32 %v1409, -7.6471636e-13
    %v1442 = vmul.f32 %v1410, -7.6471636e-13
    %v1443 = vmul.f32 %v1411, -7.6471636e-13
    %v1444 = vmul.f32 %v1412, -7.6471636e-13
    %v1445 = vadd.f32 %v1413, 1.6059044e-10
    %v1446 = vadd.f32 %v1414, 1.6059044e-10
    %v1447 = vadd.f32 %v1415, 1.6059044e-10
    %v1448 = vadd.f32 %v1416, 1.6059044e-10
    %v1449 = vadd.f32 %v1417, 1.6059044e-10
    %v1450 = vadd.f32 %v1418, 1.6059044e-10
    %v1451 = vadd.f32 %v1419, 1.6059044e-10
    %v1452 = vadd.f32 %v1420, 1.6059044e-10
    %v1453 = vadd.f32 %v1421, 1.6059044e-10
    %v1454 = vadd.f32 %v1422, 1.6059044e-10
    %v1455 = vadd.f32 %v1423, 1.6059044e-10
    %v1456 = vadd.f32 %v1424, 1.6059044e-10
    %v1457 = vadd.f32 %v1425, 1.6059044e-10
    %v1458 = vadd.f32 %v1426, 1.6059044e-10
    %v1459 = vadd.f32 %v1427, 1.6059044e-10
    %v1460 = vadd.f32 %v1428, 1.6059044e-10
    %v1461 = vadd.f32 %v1429, 1.6059044e-10
    %v1462 = vadd.f32 %v1430, 1.6059044e-10
    %v1463 = vadd.f32 %v1431, 1.6059044e-10
    %v1464 = vadd.f32 %v1432, 1.6059044e-10
    %v1465 = vadd.f32 %v1433, 1.6059044e-10
    %v1466 = vadd.f32 %v1434, 1.6059044e-10
    %v1467 = vadd.f32 %v1435, 1.6059044e-10
    %v1468 = vadd.f32 %v1436, 1.6059044e-10
    %v1469 = vadd.f32 %v1437, 1.6059044e-10
    %v1470 = vadd.f32 %v1438, 1.6059044e-10
    %v1471 = vadd.f32 %v1439, 1.6059044e-10
    %v1472 = vadd.f32 %v1440, 1.6059044e-10
    %v1473 = vadd.f32 %v1441, 1.6059044e-10
    %v1474 = vadd.f32 %v1442, 1.6059044e-10
    %v1475 = vadd.f32 %v1443, 1.6059044e-10
    %v1476 = vadd.f32 %v1444, 1.6059044e-10
    %v1477 = vmul.f32 %v1445, %v1381
    %v1478 = vmul.f32 %v1446, %v1382
    %v1479 = vmul.f32 %v1447, %v1383
    %v1480 = vmul.f32 %v1448, %v1384
    %v1481 = vmul.f32 %v1449, %v1385
    %v1482 = vmul.f32 %v1450, %v1386
    %v1483 = vmul.f32 %v1451, %v1387
    %v1484 = vmul.f32 %v1452, %v1388
    %v1485 = vmul.f32 %v1453, %v1389
    %v1486 = vmul.f32 %v1454, %v1390
    %v1487 = vmul.f32 %v1455, %v1391
    %v1488 = vmul.f32 %v1456, %v1392
    %v1489 = vmul.f32 %v1457, %v1393
    %v1490 = vmul.f32 %v1458, %v1394
    %v1491 = vmul.f32 %v1459, %v1395
    %v1492 = vmul.f32 %v1460, %v1396
    %v1493 = vmul.f32 %v1461, %v1397
    %v1494 = vmul.f32 %v1462, %v1398
    %v1495 = vmul.f32 %v1463, %v1399
    %v1496 = vmul.f32 %v1464, %v1400
    %v1497 = vmul.f32 %v1465, %v1401
    %v1498 = vmul.f32 %v1466, %v1402
    %v1499 = vmul.f32 %v1467, %v1403
    %v1500 = vmul.f32 %v1468, %v1404
    %v1501 = vmul.f32 %v1469, %v1405
    %v1502 = vmul.f32 %v1470, %v1406
    %v1503 = vmul.f32 %v1471, %v1407
    %v1504 = vmul.f32 %v1472, %v1408
    %v1505 = vmul.f32 %v1473, %v1409
    %v1506 = vmul.f32 %v1474, %v1410
    %v1507 = vmul.f32 %v1475, %v1411
    %v1508 = vmul.f32 %v1476, %v1412
    %v1509 = vadd.f32 %v1477, -2.5052108e-08
    %v1510 = vadd.f32 %v1478, -2.5052108e-08
    %v1511 = vadd.f32 %v1479, -2.5052108e-08
    %v1512 = vadd.f32 %v1480, -2.5052108e-08
    %v1513 = vadd.f32 %v1481, -2.5052108e-08
    %v1514 = vadd.f32 %v1482, -2.5052108e-08
    %v1515 = vadd.f32 %v1483, -2.5052108e-08
    %v1516 = vadd.f32 %v1484, -2.5052108e-08
    %v1517 = vadd.f32 %v1485, -2.5052108e-08
    %v1518 = vadd.f32 %v1486, -2.5052108e-08
    %v1519 = vadd.f32 %v1487, -2.5052108e-08
    %v1520 = vadd.f32 %v1488, -2.5052108e-08
    %v1521 = vadd.f32 %v1489, -2.5052108e-08
    %v1522 = vadd.f32 %v1490, -2.5052108e-08
    %v1523 = vadd.f32 %v1491, -2.5052108e-08
    %v1524 = vadd.f32 %v1492, -2.5052108e-08
    %v1525 = vadd.f32 %v1493, -2.5052108e-08
    %v1526 = vadd.f32 %v1494, -2.5052108e-08
    %v1527 = vadd.f32 %v1495, -2.5052108e-08
    %v1528 = vadd.f32 %v1496, -2.5052108e-08
    %v1529 = vadd.f32 %v1497, -2.5052108e-08
    %v1530 = vadd.f32 %v1498, -2.5052108e-08
    %v1531 = vadd.f32 %v1499, -2.5052108e-08
    %v1532 = vadd.f32 %v1500, -2.5052108e-08
    %v1533 = vadd.f32 %v1501, -2.5052108e-08
    %v1534 = vadd.f32 %v1502, -2.5052108e-08
    %v1535 = vadd.f32 %v1503, -2.5052108e-08
    %v1536 = vadd.f32 %v1504, -2.5052108e-08
    %v1537 = vadd.f32 %v1505, -2.5052108e-08
    %v1538 = vadd.f32 %v1506, -2.5052108e-08
    %v1539 = vadd.f32 %v1507, -2.5052108e-08
    %v1540 = vadd.f32 %v1508, -2.5052108e-08
    %v1541 = vmul.f32 %v1509, %v1381
    %v1542 = vmul.f32 %v1510, %v1382
    %v1543 = vmul.f32 %v1511, %v1383
    %v1544 = vmul.f32 %v1512, %v1384
    %v1545 = vmul.f32 %v1513, %v1385
    %v1546 = vmul.f32 %v1514, %v1386
    %v1547 = vmul.f32 %v1515, %v1387
    %v1548 = vmul.f32 %v1516, %v1388
    %v1549 = vmul.f32 %v1517, %v1389
    %v1550 = vmul.f32 %v1518, %v1390
    %v1551 = vmul.f32 %v1519, %v1391
    %v1552 = vmul.f32 %v1520, %v1392
    %v1553 = vmul.f32 %v1521, %v1393
    %v1554 = vmul.f32 %v1522, %v1394
    %v1555 = vmul.f32 %v1523, %v1395
    %v1556 = vmul.f32 %v1524, %v1396
    %v1557 = vmul.f32 %v1525, %v1397
    %v1558 = vmul.f32 %v1526, %v1398
    %v1559 = vmul.f32 %v1527, %v1399
    %v1560 = vmul.f32 %v1528, %v1400
    %v1561 = vmul.f32 %v1529, %v1401
    %v1562 = vmul.f32 %v1530, %v1402
    %v1563 = vmul.f32 %v1531, %v1403
    %v1564 = vmul.f32 %v1532, %v1404
    %v1565 = vmul.f32 %v1533, %v1405
    %v1566 = vmul.f32 %v1534, %v1406
    %v1567 = vmul.f32 %v1535, %v1407
    %v1568 = vmul.f32 %v1536, %v1408
    %v1569 = vmul.f32 %v1537, %v1409
    %v1570 = vmul.f32 %v1538, %v1410
    %v1571 = vmul.f32 %v1539, %v1411
    %v1572 = vmul.f32 %v1540, %v1412
    %v1573 = vadd.f32 %v1541, 2.7557319e-06
    %v1574 = vadd.f32 %v1542, 2.7557319e-06
    %v1575 = vadd.f32 %v1543, 2.7557319e-06
    %v1576 = vadd.f32 %v1544, 2.7557319e-06
    %v1577 = vadd.f32 %v1545, 2.7557319e-06
    %v1578 = vadd.f32 %v1546, 2.7557319e-06
    %v1579 = vadd.f32 %v1547, 2.7557319e-06
    %v1580 = vadd.f32 %v1548, 2.7557319e-06
    %v1581 = vadd.f32 %v1549, 2.7557319e-06
    %v1582 = vadd.f32 %v1550, 2.7557319e-06
    %v1583 = vadd.f32 %v1551, 2.7557319e-06
    %v1584 = vadd.f32 %v1552, 2.7557319e-06
    %v1585 = vadd.f32 %v1553, 2.7557319e-06
    %v1586 = vadd.f32 %v1554, 2.7557319e-06
    %v1587 = vadd.f32 %v1555, 2.7557319e-06
    %v1588 = vadd.f32 %v1556, 2.7557319e-06
    %v1589 = vadd.f32 %v1557, 2.7557319e-06
    %v1590 = vadd.f32 %v1558, 2.7557319e-06
    %v1591 = vadd.f32 %v1559, 2.7557319e-06
    %v1592 = vadd.f32 %v1560, 2.7557319e-06
    %v1593 = vadd.f32 %v1561, 2.7557319e-06
    %v1594 = vadd.f32 %v1562, 2.7557319e-06
    %v1595 = vadd.f32 %v1563, 2.7557319e-06
    %v1596 = vadd.f32 %v1564, 2.7557319e-06
    %v1597 = vadd.f32 %v1565, 2.7557319e-06
    %v1598 = vadd.f32 %v1566, 2.7557319e-06
    %v1599 = vadd.f32 %v1567, 2.7557319e-06
    %v1600 = vadd.f32 %v1568, 2.7557319e-06
    %v1601 = vadd.f32 %v1569, 2.7557319e-06
    %v1602 = vadd.f32 %v1570, 2.7557319e-06
    %v1603 = vadd.f32 %v1571, 2.7557319e-06
    %v1604 = vadd.f32 %v1572, 2.7557319e-06
    %v1605 = vmul.f32 %v1573, %v1381
    %v1606 = vmul.f32 %v1574, %v1382
    %v1607 = vmul.f32 %v1575, %v1383
    %v1608 = vmul.f32 %v1576, %v1384
    %v1609 = vmul.f32 %v1577, %v1385
    %v1610 = vmul.f32 %v1578, %v1386
    %v1611 = vmul.f32 %v1579, %v1387
    %v1612 = vmul.f32 %v1580, %v1388
    %v1613 = vmul.f32 %v1581, %v1389
    %v1614 = vmul.f32 %v1582, %v1390
    %v1615 = vmul.f32 %v1583, %v1391
    %v1616 = vmul.f32 %v1584, %v1392
    %v1617 = vmul.f32 %v1585, %v1393
    %v1618 = vmul.f32 %v1586, %v1394
    %v1619 = vmul.f32 %v1587, %v1395
    %v1620 = vmul.f32 %v1588, %v1396
    %v1621 = vmul.f32 %v1589, %v1397
    %v1622 = vmul.f32 %v1590, %v1398
    %v1623 = vmul.f32 %v1591, %v1399
    %v1624 = vmul.f32 %v1592, %v1400
    %v1625 = vmul.f32 %v1593, %v1401
    %v1626 = vmul.f32 %v1594, %v1402
    %v1627 = vmul.f32 %v1595, %v1403
    %v1628 = vmul.f32 %v1596, %v1404
    %v1629 = vmul.f32 %v1597, %v1405
    %v1630 = vmul.f32 %v1598, %v1406
    %v1631 = vmul.f32 %v1599, %v1407
    %v1632 = vmul.f32 %v1600, %v1408
    %v1633 = vmul.f32 %v1601, %v1409
    %v1634 = vmul.f32 %v1602, %v1410
    %v1635 = vmul.f32 %v1603, %v1411
    %v1636 = vmul.f32 %v1604, %v1412
    %v1637 = vadd.f32 %v1605, -0.0001984127
    %v1638 = vadd.f32 %v1606, -0.0001984127
    %v1639 = vadd.f32 %v1607, -0.0001984127
    %v1640 = vadd.f32 %v1608, -0.0001984127
    %v1641 = vadd.f32 %v1609, -0.0001984127
    %v1642 = vadd.f32 %v1610, -0.0001984127
    %v1643 = vadd.f32 %v1611, -0.0001984127
    %v1644 = vadd.f32 %v1612, -0.0001984127
    %v1645 = vadd.f32 %v1613, -0.0001984127
    %v1646 = vadd.f32 %v1614, -0.0001984127
    %v1647 = vadd.f32 %v1615, -0.0001984127
    %v1648 = vadd.f32 %v1616, -0.0001984127
    %v1649 = vadd.f32 %v1617, -0.0001984127
    %v1650 = vadd.f32 %v1618, -0.0001984127
    %v1651 = vadd.f32 %v1619, -0.0001984127
    %v1652 = vadd.f32 %v1620, -0.0001984127
    %v1653 = vadd.f32 %v1621, -0.0001984127
    %v1654 = vadd.f32 %v1622, -0.0001984127
    %v1655 = vadd.f32 %v1623, -0.0001984127
    %v1656 = vadd.f32 %v1624, -0.0001984127
    %v1657 = vadd.f32 %v1625, -0.0001984127
    %v1658 = vadd.f32 %v1626, -0.0001984127
    %v1659 = vadd.f32 %v1627, -0.0001984127
    %v1660 = vadd.f32 %v1628, -0.0001984127
    %v1661 = vadd.f32 %v1629, -0.0001984127
    %v1662 = vadd.f32 %v1630, -0.0001984127
    %v1663 = vadd.f32 %v1631, -0.0001984127
    %v1664 = vadd.f32 %v1632, -0.0001984127
    %v1665 = vadd.f32 %v1633, -0.0001984127
    %v1666 = vadd.f32 %v1634, -0.0001984127
    %v1667 = vadd.f32 %v1635, -0.0001984127
    %v1668 = vadd.f32 %v1636, -0.0001984127
    %v1669 = vmul.f32 %v1637, %v1381
    %v1670 = vmul.f32 %v1638, %v1382
    %v1671 = vmul.f32 %v1639, %v1383
    %v1672 = vmul.f32 %v1640, %v1384
    %v1673 = vmul.f32 %v1641, %v1385
    %v1674 = vmul.f32 %v1642, %v1386
    %v1675 = vmul.f32 %v1643, %v1387
    %v1676 = vmul.f32 %v1644, %v1388
    %v1677 = vmul.f32 %v1645, %v1389
    %v1678 = vmul.f32 %v1646, %v1390
    %v1679 = vmul.f32 %v1647, %v1391
    %v1680 = vmul.f32 %v1648, %v1392
    %v1681 = vmul.f32 %v1649, %v1393
    %v1682 = vmul.f32 %v1650, %v1394
    %v1683 = vmul.f32 %v1651, %v1395
    %v1684 = vmul.f32 %v1652, %v1396
    %v1685 = vmul.f32 %v1653, %v1397
    %v1686 = vmul.f32 %v1654, %v1398
    %v1687 = vmul.f32 %v1655, %v1399
    %v1688 = vmul.f32 %v1656, %v1400
    %v1689 = vmul.f32 %v1657, %v1401
    %v1690 = vmul.f32 %v1658, %v1402
    %v1691 = vmul.f32 %v1659, %v1403
    %v1692 = vmul.f32 %v1660, %v1404
    %v1693 = vmul.f32 %v1661, %v1405
    %v1694 = vmul.f32 %v1662, %v1406
    %v1695 = vmul.f32 %v1663, %v1407
    %v1696 = vmul.f32 %v1664, %v1408
    %v1697 = vmul.f32 %v1665, %v1409
    %v1698 = vmul.f32 %v1666, %v1410
    %v1699 = vmul.f32 %v1667, %v1411
    %v1700 = vmul.f32 %v1668, %v1412
    %v1701 = vadd.f32 %v1669, 0.008333334
    %v1702 = vadd.f32 %v1670, 0.008333334
    %v1703 = vadd.f32 %v1671, 0.008333334
    %v1704 = vadd.f32 %v1672, 0.008333334
    %v1705 = vadd.f32 %v1673, 0.008333334
    %v1706 = vadd.f32 %v1674, 0.008333334
    %v1707 = vadd.f32 %v1675, 0.008333334
    %v1708 = vadd.f32 %v1676, 0.008333334
    %v1709 = vadd.f32 %v1677, 0.008333334
    %v1710 = vadd.f32 %v1678, 0.008333334
    %v1711 = vadd.f32 %v1679, 0.008333334
    %v1712 = vadd.f32 %v1680, 0.008333334
    %v1713 = vadd.f32 %v1681, 0.008333334
    %v1714 = vadd.f32 %v1682, 0.008333334
    %v1715 = vadd.f32 %v1683, 0.008333334
    %v1716 = vadd.f32 %v1684, 0.008333334
    %v1717 = vadd.f32 %v1685, 0.008333334
    %v1718 = vadd.f32 %v1686, 0.008333334
    %v1719 = vadd.f32 %v1687, 0.008333334
    %v1720 = vadd.f32 %v1688, 0.008333334
    %v1721 = vadd.f32 %v1689, 0.008333334
    %v1722 = vadd.f32 %v1690, 0.008333334
    %v1723 = vadd.f32 %v1691, 0.008333334
    %v1724 = vadd.f32 %v1692, 0.008333334
    %v1725 = vadd.f32 %v1693, 0.008333334
    %v1726 = vadd.f32 %v1694, 0.008333334
    %v1727 = vadd.f32 %v1695, 0.008333334
    %v1728 = vadd.f32 %v1696, 0.008333334
    %v1729 = vadd.f32 %v1697, 0.008333334
    %v1730 = vadd.f32 %v1698, 0.008333334
    %v1731 = vadd.f32 %v1699, 0.008333334
    %v1732 = vadd.f32 %v1700, 0.008333334
    %v1733 = vmul.f32 %v1701, %v1381
    %v1734 = vmul.f32 %v1702, %v1382
    %v1735 = vmul.f32 %v1703, %v1383
    %v1736 = vmul.f32 %v1704, %v1384
    %v1737 = vmul.f32 %v1705, %v1385
    %v1738 = vmul.f32 %v1706, %v1386
    %v1739 = vmul.f32 %v1707, %v1387
    %v1740 = vmul.f32 %v1708, %v1388
    %v1741 = vmul.f32 %v1709, %v1389
    %v1742 = vmul.f32 %v1710, %v1390
    %v1743 = vmul.f32 %v1711, %v1391
    %v1744 = vmul.f32 %v1712, %v1392
    %v1745 = vmul.f32 %v1713, %v1393
    %v1746 = vmul.f32 %v1714, %v1394
    %v1747 = vmul.f32 %v1715, %v1395
    %v1748 = vmul.f32 %v1716, %v1396
    %v1749 = vmul.f32 %v1717, %v1397
    %v1750 = vmul.f32 %v1718, %v1398
    %v1751 = vmul.f32 %v1719, %v1399
    %v1752 = vmul.f32 %v1720, %v1400
    %v1753 = vmul.f32 %v1721, %v1401
    %v1754 = vmul.f32 %v1722, %v1402
    %v1755 = vmul.f32 %v1723, %v1403
    %v1756 = vmul.f32 %v1724, %v1404
    %v1757 = vmul.f32 %v1725, %v1405
    %v1758 = vmul.f32 %v1726, %v1406
    %v1759 = vmul.f32 %v1727, %v1407
    %v1760 = vmul.f32 %v1728, %v1408
    %v1761 = vmul.f32 %v1729, %v1409
    %v1762 = vmul.f32 %v1730, %v1410
    %v1763 = vmul.f32 %v1731, %v1411
    %v1764 = vmul.f32 %v1732, %v1412
    %v1765 = vadd.f32 %v1733, -0.16666667
    %v1766 = vadd.f32 %v1734, -0.16666667
    %v1767 = vadd.f32 %v1735, -0.16666667
    %v1768 = vadd.f32 %v1736, -0.16666667
    %v1769 = vadd.f32 %v1737, -0.16666667
    %v1770 = vadd.f32 %v1738, -0.16666667
    %v1771 = vadd.f32 %v1739, -0.16666667
    %v1772 = vadd.f32 %v1740, -0.16666667
    %v1773 = vadd.f32 %v1741, -0.16666667
    %v1774 = vadd.f32 %v1742, -0.16666667
    %v1775 = vadd.f32 %v1743, -0.16666667
    %v1776 = vadd.f32 %v1744, -0.16666667
    %v1777 = vadd.f32 %v1745, -0.16666667
    %v1778 = vadd.f32 %v1746, -0.16666667
    %v1779 = vadd.f32 %v1747, -0.16666667
    %v1780 = vadd.f32 %v1748, -0.16666667
    %v1781 = vadd.f32 %v1749, -0.16666667
    %v1782 = vadd.f32 %v1750, -0.16666667
    %v1783 = vadd.f32 %v1751, -0.16666667
    %v1784 = vadd.f32 %v1752, -0.16666667
    %v1785 = vadd.f32 %v1753, -0.16666667
    %v1786 = vadd.f32 %v1754, -0.16666667
    %v1787 = vadd.f32 %v1755, -0.16666667
    %v1788 = vadd.f32 %v1756, -0.16666667
    %v1789 = vadd.f32 %v1757, -0.16666667
    %v1790 = vadd.f32 %v1758, -0.16666667
    %v1791 = vadd.f32 %v1759, -0.16666667
    %v1792 = vadd.f32 %v1760, -0.16666667
    %v1793 = vadd.f32 %v1761, -0.16666667
    %v1794 = vadd.f32 %v1762, -0.16666667
    %v1795 = vadd.f32 %v1763, -0.16666667
    %v1796 = vadd.f32 %v1764, -0.16666667
    %v1797 = vmul.f32 %v1765, %v1381
    %v1798 = vmul.f32 %v1766, %v1382
    %v1799 = vmul.f32 %v1767, %v1383
    %v1800 = vmul.f32 %v1768, %v1384
    %v1801 = vmul.f32 %v1769, %v1385
    %v1802 = vmul.f32 %v1770, %v1386
    %v1803 = vmul.f32 %v1771, %v1387
    %v1804 = vmul.f32 %v1772, %v1388
    %v1805 = vmul.f32 %v1773, %v1389
    %v1806 = vmul.f32 %v1774, %v1390
    %v1807 = vmul.f32 %v1775, %v1391
    %v1808 = vmul.f32 %v1776, %v1392
    %v1809 = vmul.f32 %v1777, %v1393
    %v1810 = vmul.f32 %v1778, %v1394
    %v1811 = vmul.f32 %v1779, %v1395
    %v1812 = vmul.f32 %v1780, %v1396
    %v1813 = vmul.f32 %v1781, %v1397
    %v1814 = vmul.f32 %v1782, %v1398
    %v1815 = vmul.f32 %v1783, %v1399
    %v1816 = vmul.f32 %v1784, %v1400
    %v1817 = vmul.f32 %v1785, %v1401
    %v1818 = vmul.f32 %v1786, %v1402
    %v1819 = vmul.f32 %v1787, %v1403
    %v1820 = vmul.f32 %v1788, %v1404
    %v1821 = vmul.f32 %v1789, %v1405
    %v1822 = vmul.f32 %v1790, %v1406
    %v1823 = vmul.f32 %v1791, %v1407
    %v1824 = vmul.f32 %v1792, %v1408
    %v1825 = vmul.f32 %v1793, %v1409
    %v1826 = vmul.f32 %v1794, %v1410
    %v1827 = vmul.f32 %v1795, %v1411
    %v1828 = vmul.f32 %v1796, %v1412
    %v1829 = vadd.f32 %v1797, 1.0
    %v1830 = vadd.f32 %v1798, 1.0
    %v1831 = vadd.f32 %v1799, 1.0
    %v1832 = vadd.f32 %v1800, 1.0
    %v1833 = vadd.f32 %v1801, 1.0
    %v1834 = vadd.f32 %v1802, 1.0
    %v1835 = vadd.f32 %v1803, 1.0
    %v1836 = vadd.f32 %v1804, 1.0
    %v1837 = vadd.f32 %v1805, 1.0
    %v1838 = vadd.f32 %v1806, 1.0
    %v1839 = vadd.f32 %v1807, 1.0
    %v1840 = vadd.f32 %v1808, 1.0
    %v1841 = vadd.f32 %v1809, 1.0
    %v1842 = vadd.f32 %v1810, 1.0
    %v1843 = vadd.f32 %v1811, 1.0
    %v1844 = vadd.f32 %v1812, 1.0
    %v1845 = vadd.f32 %v1813, 1.0
    %v1846 = vadd.f32 %v1814, 1.0
    %v1847 = vadd.f32 %v1815, 1.0
    %v1848 = vadd.f32 %v1816, 1.0
    %v1849 = vadd.f32 %v1817, 1.0
    %v1850 = vadd.f32 %v1818, 1.0
    %v1851 = vadd.f32 %v1819, 1.0
    %v1852 = vadd.f32 %v1820, 1.0
    %v1853 = vadd.f32 %v1821, 1.0
    %v1854 = vadd.f32 %v1822, 1.0
    %v1855 = vadd.f32 %v1823, 1.0
    %v1856 = vadd.f32 %v1824, 1.0
    %v1857 = vadd.f32 %v1825, 1.0
    %v1858 = vadd.f32 %v1826, 1.0
    %v1859 = vadd.f32 %v1827, 1.0
    %v1860 = vadd.f32 %v1828, 1.0
    %v1861 = vmul.f32 %v1381, 4.7794773e-14
    %v1862 = vmul.f32 %v1382, 4.7794773e-14
    %v1863 = vmul.f32 %v1383, 4.7794773e-14
    %v1864 = vmul.f32 %v1384, 4.7794773e-14
    %v1865 = vmul.f32 %v1385, 4.7794773e-14
    %v1866 = vmul.f32 %v1386, 4.7794773e-14
    %v1867 = vmul.f32 %v1387, 4.7794773e-14
    %v1868 = vmul.f32 %v1388, 4.7794773e-14
    %v1869 = vmul.f32 %v1389, 4.7794773e-14
    %v1870 = vmul.f32 %v1390, 4.7794773e-14
    %v1871 = vmul.f32 %v1391, 4.7794773e-14
    %v1872 = vmul.f32 %v1392, 4.7794773e-14
    %v1873 = vmul.f32 %v1393, 4.7794773e-14
    %v1874 = vmul.f32 %v1394, 4.7794773e-14
    %v1875 = vmul.f32 %v1395, 4.7794773e-14
    %v1876 = vmul.f32 %v1396, 4.7794773e-14
    %v1877 = vmul.f32 %v1397, 4.7794773e-14
    %v1878 = vmul.f32 %v1398, 4.7794773e-14
    %v1879 = vmul.f32 %v1399, 4.7794773e-14
    %v1880 = vmul.f32 %v1400, 4.7794773e-14
    %v1881 = vmul.f32 %v1401, 4.7794773e-14
    %v1882 = vmul.f32 %v1402, 4.7794773e-14
    %v1883 = vmul.f32 %v1403, 4.7794773e-14
    %v1884 = vmul.f32 %v1404, 4.7794773e-14
    %v1885 = vmul.f32 %v1405, 4.7794773e-14
    %v1886 = vmul.f32 %v1406, 4.7794773e-14
    %v1887 = vmul.f32 %v1407, 4.7794773e-14
    %v1888 = vmul.f32 %v1408, 4.7794773e-14
    %v1889 = vmul.f32 %v1409, 4.7794773e-14
    %v1890 = vmul.f32 %v1410, 4.7794773e-14
    %v1891 = vmul.f32 %v1411, 4.7794773e-14
    %v1892 = vmul.f32 %v1412, 4.7794773e-14
    %v1893 = vadd.f32 %v1861, -1.1470745e-11
    %v1894 = vadd.f32 %v1862, -1.1470745e-11
    %v1895 = vadd.f32 %v1863, -1.1470745e-11
    %v1896 = vadd.f32 %v1864, -1.1470745e-11
    %v1897 = vadd.f32 %v1865, -1.1470745e-11
    %v1898 = vadd.f32 %v1866, -1.1470745e-11
    %v1899 = vadd.f32 %v1867, -1.1470745e-11
    %v1900 = vadd.f32 %v1868, -1.1470745e-11
    %v1901 = vadd.f32 %v1869, -1.1470745e-11
    %v1902 = vadd.f32 %v1870, -1.1470745e-11
    %v1903 = vadd.f32 %v1871, -1.1470745e-11
    %v1904 = vadd.f32 %v1872, -1.1470745e-11
    %v1905 = vadd.f32 %v1873, -1.1470745e-11
    %v1906 = vadd.f32 %v1874, -1.1470745e-11
    %v1907 = vadd.f32 %v1875, -1.1470745e-11
    %v1908 = vadd.f32 %v1876, -1.1470745e-11
    %v1909 = vadd.f32 %v1877, -1.1470745e-11
    %v1910 = vadd.f32 %v1878, -1.1470745e-11
    %v1911 = vadd.f32 %v1879, -1.1470745e-11
    %v1912 = vadd.f32 %v1880, -1.1470745e-11
    %v1913 = vadd.f32 %v1881, -1.1470745e-11
    %v1914 = vadd.f32 %v1882, -1.1470745e-11
    %v1915 = vadd.f32 %v1883, -1.1470745e-11
    %v1916 = vadd.f32 %v1884, -1.1470745e-11
    %v1917 = vadd.f32 %v1885, -1.1470745e-11
    %v1918 = vadd.f32 %v1886, -1.1470745e-11
    %v1919 = vadd.f32 %v1887, -1.1470745e-11
    %v1920 = vadd.f32 %v1888, -1.1470745e-11
    %v1921 = vadd.f32 %v1889, -1.1470745e-11
    %v1922 = vadd.f32 %v1890, -1.1470745e-11
    %v1923 = vadd.f32 %v1891, -1.1470745e-11
    %v1924 = vadd.f32 %v1892, -1.1470745e-11
    %v1925 = vmul.f32 %v1893, %v1381
    %v1926 = vmul.f32 %v1894, %v1382
    %v1927 = vmul.f32 %v1895, %v1383
    %v1928 = vmul.f32 %v1896, %v1384
    %v1929 = vmul.f32 %v1897, %v1385
    %v1930 = vmul.f32 %v1898, %v1386
    %v1931 = vmul.f32 %v1899, %v1387
    %v1932 = vmul.f32 %v1900, %v1388
    %v1933 = vmul.f32 %v1901, %v1389
    %v1934 = vmul.f32 %v1902, %v1390
    %v1935 = vmul.f32 %v1903, %v1391
    %v1936 = vmul.f32 %v1904, %v1392
    %v1937 = vmul.f32 %v1905, %v1393
    %v1938 = vmul.f32 %v1906, %v1394
    %v1939 = vmul.f32 %v1907, %v1395
    %v1940 = vmul.f32 %v1908, %v1396
    %v1941 = vmul.f32 %v1909, %v1397
    %v1942 = vmul.f32 %v1910, %v1398
    %v1943 = vmul.f32 %v1911, %v1399
    %v1944 = vmul.f32 %v1912, %v1400
    %v1945 = vmul.f32 %v1913, %v1401
    %v1946 = vmul.f32 %v1914, %v1402
    %v1947 = vmul.f32 %v1915, %v1403
    %v1948 = vmul.f32 %v1916, %v1404
    %v1949 = vmul.f32 %v1917, %v1405
    %v1950 = vmul.f32 %v1918, %v1406
    %v1951 = vmul.f32 %v1919, %v1407
    %v1952 = vmul.f32 %v1920, %v1408
    %v1953 = vmul.f32 %v1921, %v1409
    %v1954 = vmul.f32 %v1922, %v1410
    %v1955 = vmul.f32 %v1923, %v1411
    %v1956 = vmul.f32 %v1924, %v1412
    %v1957 = vadd.f32 %v1925, 2.0876756e-09
    %v1958 = vadd.f32 %v1926, 2.0876756e-09
    %v1959 = vadd.f32 %v1927, 2.0876756e-09
    %v1960 = vadd.f32 %v1928, 2.0876756e-09
    %v1961 = vadd.f32 %v1929, 2.0876756e-09
    %v1962 = vadd.f32 %v1930, 2.0876756e-09
    %v1963 = vadd.f32 %v1931, 2.0876756e-09
    %v1964 = vadd.f32 %v1932, 2.0876756e-09
    %v1965 = vadd.f32 %v1933, 2.0876756e-09
    %v1966 = vadd.f32 %v1934, 2.0876756e-09
    %v1967 = vadd.f32 %v1935, 2.0876756e-09
    %v1968 = vadd.f32 %v1936, 2.0876756e-09
    %v1969 = vadd.f32 %v1937, 2.0876756e-09
    %v1970 = vadd.f32 %v1938, 2.0876756e-09
    %v1971 = vadd.f32 %v1939, 2.0876756e-09
    %v1972 = vadd.f32 %v1940, 2.0876756e-09
    %v1973 = vadd.f32 %v1941, 2.0876756e-09
    %v1974 = vadd.f32 %v1942, 2.0876756e-09
    %v1975 = vadd.f32 %v1943, 2.0876756e-09
    %v1976 = vadd.f32 %v1944, 2.0876756e-09
    %v1977 = vadd.f32 %v1945, 2.0876756e-09
    %v1978 = vadd.f32 %v1946, 2.0876756e-09
    %v1979 = vadd.f32 %v1947, 2.0876756e-09
    %v1980 = vadd.f32 %v1948, 2.0876756e-09
    %v1981 = vadd.f32 %v1949, 2.0876756e-09
    %v1982 = vadd.f32 %v1950, 2.0876756e-09
    %v1983 = vadd.f32 %v1951, 2.0876756e-09
    %v1984 = vadd.f32 %v1952, 2.0876756e-09
    %v1985 = vadd.f32 %v1953, 2.0876756e-09
    %v1986 = vadd.f32 %v1954, 2.0876756e-09
    %v1987 = vadd.f32 %v1955, 2.0876756e-09
    %v1988 = vadd.f32 %v1956, 2.0876756e-09
    %v1989 = vmul.f32 %v1957, %v1381
    %v1990 = vmul.f32 %v1958, %v1382
    %v1991 = vmul.f32 %v1959, %v1383
    %v1992 = vmul.f32 %v1960, %v1384
    %v1993 = vmul.f32 %v1961, %v1385
    %v1994 = vmul.f32 %v1962, %v1386
    %v1995 = vmul.f32 %v1963, %v1387
    %v1996 = vmul.f32 %v1964, %v1388
    %v1997 = vmul.f32 %v1965, %v1389
    %v1998 = vmul.f32 %v1966, %v1390
    %v1999 = vmul.f32 %v1967, %v1391
    %v2000 = vmul.f32 %v1968, %v1392
    %v2001 = vmul.f32 %v1969, %v1393
    %v2002 = vmul.f32 %v1970, %v1394
    %v2003 = vmul.f32 %v1971, %v1395
    %v2004 = vmul.f32 %v1972, %v1396
    %v2005 = vmul.f32 %v1973, %v1397
    %v2006 = vmul.f32 %v1974, %v1398
    %v2007 = vmul.f32 %v1975, %v1399
    %v2008 = vmul.f32 %v1976, %v1400
    %v2009 = vmul.f32 %v1977, %v1401
    %v2010 = vmul.f32 %v1978, %v1402
    %v2011 = vmul.f32 %v1979, %v1403
    %v2012 = vmul.f32 %v1980, %v1404
    %v2013 = vmul.f32 %v1981, %v1405
    %v2014 = vmul.f32 %v1982, %v1406
    %v2015 = vmul.f32 %v1983, %v1407
    %v2016 = vmul.f32 %v1984, %v1408
    %v2017 = vmul.f32 %v1985, %v1409
    %v2018 = vmul.f32 %v1986, %v1410
    %v2019 = vmul.f32 %v1987, %v1411
    %v2020 = vmul.f32 %v1988, %v1412
    %v2021 = vadd.f32 %v1989, -2.755732e-07
    %v2022 = vadd.f32 %v1990, -2.755732e-07
    %v2023 = vadd.f32 %v1991, -2.755732e-07
    %v2024 = vadd.f32 %v1992, -2.755732e-07
    %v2025 = vadd.f32 %v1993, -2.755732e-07
    %v2026 = vadd.f32 %v1994, -2.755732e-07
    %v2027 = vadd.f32 %v1995, -2.755732e-07
    %v2028 = vadd.f32 %v1996, -2.755732e-07
    %v2029 = vadd.f32 %v1997, -2.755732e-07
    %v2030 = vadd.f32 %v1998, -2.755732e-07
    %v2031 = vadd.f32 %v1999, -2.755732e-07
    %v2032 = vadd.f32 %v2000, -2.755732e-07
    %v2033 = vadd.f32 %v2001, -2.755732e-07
    %v2034 = vadd.f32 %v2002, -2.755732e-07
    %v2035 = vadd.f32 %v2003, -2.755732e-07
    %v2036 = vadd.f32 %v2004, -2.755732e-07
    %v2037 = vadd.f32 %v2005, -2.755732e-07
    %v2038 = vadd.f32 %v2006, -2.755732e-07
    %v2039 = vadd.f32 %v2007, -2.755732e-07
    %v2040 = vadd.f32 %v2008, -2.755732e-07
    %v2041 = vadd.f32 %v2009, -2.755732e-07
    %v2042 = vadd.f32 %v2010, -2.755732e-07
    %v2043 = vadd.f32 %v2011, -2.755732e-07
    %v2044 = vadd.f32 %v2012, -2.755732e-07
    %v2045 = vadd.f32 %v2013, -2.755732e-07
    %v2046 = vadd.f32 %v2014, -2.755732e-07
    %v2047 = vadd.f32 %v2015, -2.755732e-07
    %v2048 = vadd.f32 %v2016, -2.755732e-07
    %v2049 = vadd.f32 %v2017, -2.755732e-07
    %v2050 = vadd.f32 %v2018, -2.755732e-07
    %v2051 = vadd.f32 %v2019, -2.755732e-07
    %v2052 = vadd.f32 %v2020, -2.755732e-07
    %v2053 = vmul.f32 %v2021, %v1381
    %v2054 = vmul.f32 %v2022, %v1382
    %v2055 = vmul.f32 %v2023, %v1383
    %v2056 = vmul.f32 %v2024, %v1384
    %v2057 = vmul.f32 %v2025, %v1385
    %v2058 = vmul.f32 %v2026, %v1386
    %v2059 = vmul.f32 %v2027, %v1387
    %v2060 = vmul.f32 %v2028, %v1388
    %v2061 = vmul.f32 %v2029, %v1389
    %v2062 = vmul.f32 %v2030, %v1390
    %v2063 = vmul.f32 %v2031, %v1391
    %v2064 = vmul.f32 %v2032, %v1392
    %v2065 = vmul.f32 %v2033, %v1393
    %v2066 = vmul.f32 %v2034, %v1394
    %v2067 = vmul.f32 %v2035, %v1395
    %v2068 = vmul.f32 %v2036, %v1396
    %v2069 = vmul.f32 %v2037, %v1397
    %v2070 = vmul.f32 %v2038, %v1398
    %v2071 = vmul.f32 %v2039, %v1399
    %v2072 = vmul.f32 %v2040, %v1400
    %v2073 = vmul.f32 %v2041, %v1401
    %v2074 = vmul.f32 %v2042, %v1402
    %v2075 = vmul.f32 %v2043, %v1403
    %v2076 = vmul.f32 %v2044, %v1404
    %v2077 = vmul.f32 %v2045, %v1405
    %v2078 = vmul.f32 %v2046, %v1406
    %v2079 = vmul.f32 %v2047, %v1407
    %v2080 = vmul.f32 %v2048, %v1408
    %v2081 = vmul.f32 %v2049, %v1409
    %v2082 = vmul.f32 %v2050, %v1410
    %v2083 = vmul.f32 %v2051, %v1411
    %v2084 = vmul.f32 %v2052, %v1412
    %v2085 = vadd.f32 %v2053, 2.4801588e-05
    %v2086 = vadd.f32 %v2054, 2.4801588e-05
    %v2087 = vadd.f32 %v2055, 2.4801588e-05
    %v2088 = vadd.f32 %v2056, 2.4801588e-05
    %v2089 = vadd.f32 %v2057, 2.4801588e-05
    %v2090 = vadd.f32 %v2058, 2.4801588e-05
    %v2091 = vadd.f32 %v2059, 2.4801588e-05
    %v2092 = vadd.f32 %v2060, 2.4801588e-05
    %v2093 = vadd.f32 %v2061, 2.4801588e-05
    %v2094 = vadd.f32 %v2062, 2.4801588e-05
    %v2095 = vadd.f32 %v2063, 2.4801588e-05
    %v2096 = vadd.f32 %v2064, 2.4801588e-05
    %v2097 = vadd.f32 %v2065, 2.4801588e-05
    %v2098 = vadd.f32 %v2066, 2.4801588e-05
    %v2099 = vadd.f32 %v2067, 2.4801588e-05
    %v2100 = vadd.f32 %v2068, 2.4801588e-05
    %v2101 = vadd.f32 %v2069, 2.4801588e-05
    %v2102 = vadd.f32 %v2070, 2.4801588e-05
    %v2103 = vadd.f32 %v2071, 2.4801588e-05
    %v2104 = vadd.f32 %v2072, 2.4801588e-05
    %v2105 = vadd.f32 %v2073, 2.4801588e-05
    %v2106 = vadd.f32 %v2074, 2.4801588e-05
    %v2107 = vadd.f32 %v2075, 2.4801588e-05
    %v2108 = vadd.f32 %v2076, 2.4801588e-05
    %v2109 = vadd.f32 %v2077, 2.4801588e-05
    %v2110 = vadd.f32 %v2078, 2.4801588e-05
    %v2111 = vadd.f32 %v2079, 2.4801588e-05
    %v2112 = vadd.f32 %v2080, 2.4801588e-05
    %v2113 = vadd.f32 %v2081, 2.4801588e-05
    %v2114 = vadd.f32 %v2082, 2.4801588e-05
    %v2115 = vadd.f32 %v2083, 2.4801588e-05
    %v2116 = vadd.f32 %v2084, 2.4801588e-05
    %v2117 = vmul.f32 %v2085, %v1381
    %v2118 = vmul.f32 %v2086, %v1382
    %v2119 = vmul.f32 %v2087, %v1383
    %v2120 = vmul.f32 %v2088, %v1384
    %v2121 = vmul.f32 %v2089, %v1385
    %v2122 = vmul.f32 %v2090, %v1386
    %v2123 = vmul.f32 %v2091, %v1387
    %v2124 = vmul.f32 %v2092, %v1388
    %v2125 = vmul.f32 %v2093, %v1389
    %v2126 = vmul.f32 %v2094, %v1390
    %v2127 = vmul.f32 %v2095, %v1391
    %v2128 = vmul.f32 %v2096, %v1392
    %v2129 = vmul.f32 %v2097, %v1393
    %v2130 = vmul.f32 %v2098, %v1394
    %v2131 = vmul.f32 %v2099, %v1395
    %v2132 = vmul.f32 %v2100, %v1396
    %v2133 = vmul.f32 %v2101, %v1397
    %v2134 = vmul.f32 %v2102, %v1398
    %v2135 = vmul.f32 %v2103, %v1399
    %v2136 = vmul.f32 %v2104, %v1400
    %v2137 = vmul.f32 %v2105, %v1401
    %v2138 = vmul.f32 %v2106, %v1402
    %v2139 = vmul.f32 %v2107, %v1403
    %v2140 = vmul.f32 %v2108, %v1404
    %v2141 = vmul.f32 %v2109, %v1405
    %v2142 = vmul.f32 %v2110, %v1406
    %v2143 = vmul.f32 %v2111, %v1407
    %v2144 = vmul.f32 %v2112, %v1408
    %v2145 = vmul.f32 %v2113, %v1409
    %v2146 = vmul.f32 %v2114, %v1410
    %v2147 = vmul.f32 %v2115, %v1411
    %v2148 = vmul.f32 %v2116, %v1412
    %v2149 = vadd.f32 %v2117, -0.0013888889
    %v2150 = vadd.f32 %v2118, -0.0013888889
    %v2151 = vadd.f32 %v2119, -0.0013888889
    %v2152 = vadd.f32 %v2120, -0.0013888889
    %v2153 = vadd.f32 %v2121, -0.0013888889
    %v2154 = vadd.f32 %v2122, -0.0013888889
    %v2155 = vadd.f32 %v2123, -0.0013888889
    %v2156 = vadd.f32 %v2124, -0.0013888889
    %v2157 = vadd.f32 %v2125, -0.0013888889
    %v2158 = vadd.f32 %v2126, -0.0013888889
    %v2159 = vadd.f32 %v2127, -0.0013888889
    %v2160 = vadd.f32 %v2128, -0.0013888889
    %v2161 = vadd.f32 %v2129, -0.0013888889
    %v2162 = vadd.f32 %v2130, -0.0013888889
    %v2163 = vadd.f32 %v2131, -0.0013888889
    %v2164 = vadd.f32 %v2132, -0.0013888889
    %v2165 = vadd.f32 %v2133, -0.0013888889
    %v2166 = vadd.f32 %v2134, -0.0013888889
    %v2167 = vadd.f32 %v2135, -0.0013888889
    %v2168 = vadd.f32 %v2136, -0.0013888889
    %v2169 = vadd.f32 %v2137, -0.0013888889
    %v2170 = vadd.f32 %v2138, -0.0013888889
    %v2171 = vadd.f32 %v2139, -0.0013888889
    %v2172 = vadd.f32 %v2140, -0.0013888889
    %v2173 = vadd.f32 %v2141, -0.0013888889
    %v2174 = vadd.f32 %v2142, -0.0013888889
    %v2175 = vadd.f32 %v2143, -0.0013888889
    %v2176 = vadd.f32 %v2144, -0.0013888889
    %v2177 = vadd.f32 %v2145, -0.0013888889
    %v2178 = vadd.f32 %v2146, -0.0013888889
    %v2179 = vadd.f32 %v2147, -0.0013888889
    %v2180 = vadd.f32 %v2148, -0.0013888889
    %v2181 = vmul.f32 %v2149, %v1381
    %v2182 = vmul.f32 %v2150, %v1382
    %v2183 = vmul.f32 %v2151, %v1383
    %v2184 = vmul.f32 %v2152, %v1384
    %v2185 = vmul.f32 %v2153, %v1385
    %v2186 = vmul.f32 %v2154, %v1386
    %v2187 = vmul.f32 %v2155, %v1387
    %v2188 = vmul.f32 %v2156, %v1388
    %v2189 = vmul.f32 %v2157, %v1389
    %v2190 = vmul.f32 %v2158, %v1390
    %v2191 = vmul.f32 %v2159, %v1391
    %v2192 = vmul.f32 %v2160, %v1392
    %v2193 = vmul.f32 %v2161, %v1393
    %v2194 = vmul.f32 %v2162, %v1394
    %v2195 = vmul.f32 %v2163, %v1395
    %v2196 = vmul.f32 %v2164, %v1396
    %v2197 = vmul.f32 %v2165, %v1397
    %v2198 = vmul.f32 %v2166, %v1398
    %v2199 = vmul.f32 %v2167, %v1399
    %v2200 = vmul.f32 %v2168, %v1400
    %v2201 = vmul.f32 %v2169, %v1401
    %v2202 = vmul.f32 %v2170, %v1402
    %v2203 = vmul.f32 %v2171, %v1403
    %v2204 = vmul.f32 %v2172, %v1404
    %v2205 = vmul.f32 %v2173, %v1405
    %v2206 = vmul.f32 %v2174, %v1406
    %v2207 = vmul.f32 %v2175, %v1407
    %v2208 = vmul.f32 %v2176, %v1408
    %v2209 = vmul.f32 %v2177, %v1409
    %v2210 = vmul.f32 %v2178, %v1410
    %v2211 = vmul.f32 %v2179, %v1411
    %v2212 = vmul.f32 %v2180, %v1412
    %v2213 = vadd.f32 %v2181, 0.041666668
    %v2214 = vadd.f32 %v2182, 0.041666668
    %v2215 = vadd.f32 %v2183, 0.041666668
    %v2216 = vadd.f32 %v2184, 0.041666668
    %v2217 = vadd.f32 %v2185, 0.041666668
    %v2218 = vadd.f32 %v2186, 0.041666668
    %v2219 = vadd.f32 %v2187, 0.041666668
    %v2220 = vadd.f32 %v2188, 0.041666668
    %v2221 = vadd.f32 %v2189, 0.041666668
    %v2222 = vadd.f32 %v2190, 0.041666668
    %v2223 = vadd.f32 %v2191, 0.041666668
    %v2224 = vadd.f32 %v2192, 0.041666668
    %v2225 = vadd.f32 %v2193, 0.041666668
    %v2226 = vadd.f32 %v2194, 0.041666668
    %v2227 = vadd.f32 %v2195, 0.041666668
    %v2228 = vadd.f32 %v2196, 0.041666668
    %v2229 = vadd.f32 %v2197, 0.041666668
    %v2230 = vadd.f32 %v2198, 0.041666668
    %v2231 = vadd.f32 %v2199, 0.041666668
    %v2232 = vadd.f32 %v2200, 0.041666668
    %v2233 = vadd.f32 %v2201, 0.041666668
    %v2234 = vadd.f32 %v2202, 0.041666668
    %v2235 = vadd.f32 %v2203, 0.041666668
    %v2236 = vadd.f32 %v2204, 0.041666668
    %v2237 = vadd.f32 %v2205, 0.041666668
    %v2238 = vadd.f32 %v2206, 0.041666668
    %v2239 = vadd.f32 %v2207, 0.041666668
    %v2240 = vadd.f32 %v2208, 0.041666668
    %v2241 = vadd.f32 %v2209, 0.041666668
    %v2242 = vadd.f32 %v2210, 0.041666668
    %v2243 = vadd.f32 %v2211, 0.041666668
    %v2244 = vadd.f32 %v2212, 0.041666668
    %v2245 = vmul.f32 %v2213, %v1381
    %v2246 = vmul.f32 %v2214, %v1382
    %v2247 = vmul.f32 %v2215, %v1383
    %v2248 = vmul.f32 %v2216, %v1384
    %v2249 = vmul.f32 %v2217, %v1385
    %v2250 = vmul.f32 %v2218, %v1386
    %v2251 = vmul.f32 %v2219, %v1387
    %v2252 = vmul.f32 %v2220, %v1388
    %v2253 = vmul.f32 %v2221, %v1389
    %v2254 = vmul.f32 %v2222, %v1390
    %v2255 = vmul.f32 %v2223, %v1391
    %v2256 = vmul.f32 %v2224, %v1392
    %v2257 = vmul.f32 %v2225, %v1393
    %v2258 = vmul.f32 %v2226, %v1394
    %v2259 = vmul.f32 %v2227, %v1395
    %v2260 = vmul.f32 %v2228, %v1396
    %v2261 = vmul.f32 %v2229, %v1397
    %v2262 = vmul.f32 %v2230, %v1398
    %v2263 = vmul.f32 %v2231, %v1399
    %v2264 = vmul.f32 %v2232, %v1400
    %v2265 = vmul.f32 %v2233, %v1401
    %v2266 = vmul.f32 %v2234, %v1402
    %v2267 = vmul.f32 %v2235, %v1403
    %v2268 = vmul.f32 %v2236, %v1404
    %v2269 = vmul.f32 %v2237, %v1405
    %v2270 = vmul.f32 %v2238, %v1406
    %v2271 = vmul.f32 %v2239, %v1407
    %v2272 = vmul.f32 %v2240, %v1408
    %v2273 = vmul.f32 %v2241, %v1409
    %v2274 = vmul.f32 %v2242, %v1410
    %v2275 = vmul.f32 %v2243, %v1411
    %v2276 = vmul.f32 %v2244, %v1412
    %v2277 = vadd.f32 %v2245, -0.5
    %v2278 = vadd.f32 %v2246, -0.5
    %v2279 = vadd.f32 %v2247, -0.5
    %v2280 = vadd.f32 %v2248, -0.5
    %v2281 = vadd.f32 %v2249, -0.5
    %v2282 = vadd.f32 %v2250, -0.5
    %v2283 = vadd.f32 %v2251, -0.5
    %v2284 = vadd.f32 %v2252, -0.5
    %v2285 = vadd.f32 %v2253, -0.5
    %v2286 = vadd.f32 %v2254, -0.5
    %v2287 = vadd.f32 %v2255, -0.5
    %v2288 = vadd.f32 %v2256, -0.5
    %v2289 = vadd.f32 %v2257, -0.5
    %v2290 = vadd.f32 %v2258, -0.5
    %v2291 = vadd.f32 %v2259, -0.5
    %v2292 = vadd.f32 %v2260, -0.5
    %v2293 = vadd.f32 %v2261, -0.5
    %v2294 = vadd.f32 %v2262, -0.5
    %v2295 = vadd.f32 %v2263, -0.5
    %v2296 = vadd.f32 %v2264, -0.5
    %v2297 = vadd.f32 %v2265, -0.5
    %v2298 = vadd.f32 %v2266, -0.5
    %v2299 = vadd.f32 %v2267, -0.5
    %v2300 = vadd.f32 %v2268, -0.5
    %v2301 = vadd.f32 %v2269, -0.5
    %v2302 = vadd.f32 %v2270, -0.5
    %v2303 = vadd.f32 %v2271, -0.5
    %v2304 = vadd.f32 %v2272, -0.5
    %v2305 = vadd.f32 %v2273, -0.5
    %v2306 = vadd.f32 %v2274, -0.5
    %v2307 = vadd.f32 %v2275, -0.5
    %v2308 = vadd.f32 %v2276, -0.5
    %v2309 = vmul.f32 %v2277, %v1381
    %v2310 = vmul.f32 %v2278, %v1382
    %v2311 = vmul.f32 %v2279, %v1383
    %v2312 = vmul.f32 %v2280, %v1384
    %v2313 = vmul.f32 %v2281, %v1385
    %v2314 = vmul.f32 %v2282, %v1386
    %v2315 = vmul.f32 %v2283, %v1387
    %v2316 = vmul.f32 %v2284, %v1388
    %v2317 = vmul.f32 %v2285, %v1389
    %v2318 = vmul.f32 %v2286, %v1390
    %v2319 = vmul.f32 %v2287, %v1391
    %v2320 = vmul.f32 %v2288, %v1392
    %v2321 = vmul.f32 %v2289, %v1393
    %v2322 = vmul.f32 %v2290, %v1394
    %v2323 = vmul.f32 %v2291, %v1395
    %v2324 = vmul.f32 %v2292, %v1396
    %v2325 = vmul.f32 %v2293, %v1397
    %v2326 = vmul.f32 %v2294, %v1398
    %v2327 = vmul.f32 %v2295, %v1399
    %v2328 = vmul.f32 %v2296, %v1400
    %v2329 = vmul.f32 %v2297, %v1401
    %v2330 = vmul.f32 %v2298, %v1402
    %v2331 = vmul.f32 %v2299, %v1403
    %v2332 = vmul.f32 %v2300, %v1404
    %v2333 = vmul.f32 %v2301, %v1405
    %v2334 = vmul.f32 %v2302, %v1406
    %v2335 = vmul.f32 %v2303, %v1407
    %v2336 = vmul.f32 %v2304, %v1408
    %v2337 = vmul.f32 %v2305, %v1409
    %v2338 = vmul.f32 %v2306, %v1410
    %v2339 = vmul.f32 %v2307, %v1411
    %v2340 = vmul.f32 %v2308, %v1412
    %v2341 = vadd.f32 %v2309, 1.0
    %v2342 = vadd.f32 %v2310, 1.0
    %v2343 = vadd.f32 %v2311, 1.0
    %v2344 = vadd.f32 %v2312, 1.0
    %v2345 = vadd.f32 %v2313, 1.0
    %v2346 = vadd.f32 %v2314, 1.0
    %v2347 = vadd.f32 %v2315, 1.0
    %v2348 = vadd.f32 %v2316, 1.0
    %v2349 = vadd.f32 %v2317, 1.0
    %v2350 = vadd.f32 %v2318, 1.0
    %v2351 = vadd.f32 %v2319, 1.0
    %v2352 = vadd.f32 %v2320, 1.0
    %v2353 = vadd.f32 %v2321, 1.0
    %v2354 = vadd.f32 %v2322, 1.0
    %v2355 = vadd.f32 %v2323, 1.0
    %v2356 = vadd.f32 %v2324, 1.0
    %v2357 = vadd.f32 %v2325, 1.0
    %v2358 = vadd.f32 %v2326, 1.0
    %v2359 = vadd.f32 %v2327, 1.0
    %v2360 = vadd.f32 %v2328, 1.0
    %v2361 = vadd.f32 %v2329, 1.0
    %v2362 = vadd.f32 %v2330, 1.0
    %v2363 = vadd.f32 %v2331, 1.0
    %v2364 = vadd.f32 %v2332, 1.0
    %v2365 = vadd.f32 %v2333, 1.0
    %v2366 = vadd.f32 %v2334, 1.0
    %v2367 = vadd.f32 %v2335, 1.0
    %v2368 = vadd.f32 %v2336, 1.0
    %v2369 = vadd.f32 %v2337, 1.0
    %v2370 = vadd.f32 %v2338, 1.0
    %v2371 = vadd.f32 %v2339, 1.0
    %v2372 = vadd.f32 %v2340, 1.0
    %v2373 = vmul.f32 %v1349, %v1829
    %v2374 = vmul.f32 %v1350, %v1830
    %v2375 = vmul.f32 %v1351, %v1831
    %v2376 = vmul.f32 %v1352, %v1832
    %v2377 = vmul.f32 %v1353, %v1833
    %v2378 = vmul.f32 %v1354, %v1834
    %v2379 = vmul.f32 %v1355, %v1835
    %v2380 = vmul.f32 %v1356, %v1836
    %v2381 = vmul.f32 %v1357, %v1837
    %v2382 = vmul.f32 %v1358, %v1838
    %v2383 = vmul.f32 %v1359, %v1839
    %v2384 = vmul.f32 %v1360, %v1840
    %v2385 = vmul.f32 %v1361, %v1841
    %v2386 = vmul.f32 %v1362, %v1842
    %v2387 = vmul.f32 %v1363, %v1843
    %v2388 = vmul.f32 %v1364, %v1844
    %v2389 = vmul.f32 %v1365, %v1845
    %v2390 = vmul.f32 %v1366, %v1846
    %v2391 = vmul.f32 %v1367, %v1847
    %v2392 = vmul.f32 %v1368, %v1848
    %v2393 = vmul.f32 %v1369, %v1849
    %v2394 = vmul.f32 %v1370, %v1850
    %v2395 = vmul.f32 %v1371, %v1851
    %v2396 = vmul.f32 %v1372, %v1852
    %v2397 = vmul.f32 %v1373, %v1853
    %v2398 = vmul.f32 %v1374, %v1854
    %v2399 = vmul.f32 %v1375, %v1855
    %v2400 = vmul.f32 %v1376, %v1856
    %v2401 = vmul.f32 %v1377, %v1857
    %v2402 = vmul.f32 %v1378, %v1858
    %v2403 = vmul.f32 %v1379, %v1859
    %v2404 = vmul.f32 %v1380, %v1860
    %2405 = vst [vmem:[#allocation2] sm:$0xff] %v2373
    %2406 = vst [vmem:[#allocation2 + $0x8] sm:$0xff] %v2374
    %2407 = vst [vmem:[#allocation2 + $0x20] sm:$0xff] %v2375
    %2408 = vst [vmem:[#allocation2 + $0x28] sm:$0xff] %v2376
    %2409 = vst [vmem:[#allocation2 + $0x40] sm:$0xff] %v2377
    %2410 = vst [vmem:[#allocation2 + $0x48] sm:$0xff] %v2378
    %2411 = vst [vmem:[#allocation2 + $0x60] sm:$0xff] %v2379
    %2412 = vst [vmem:[#allocation2 + $0x68] sm:$0xff] %v2380
    %2413 = vst [vmem:[#allocation2 + $0x80] sm:$0xff] %v2381
    %2414 = vst [vmem:[#allocation2 + $0x88] sm:$0xff] %v2382
    %2415 = vst [vmem:[#allocation2 + $0xa0] sm:$0xff] %v2383
    %2416 = vst [vmem:[#allocation2 + $0xa8] sm:$0xff] %v2384
    %2417 = vst [vmem:[#allocation2 + $0xc0] sm:$0xff] %v2385
    %2418 = vst [vmem:[#allocation2 + $0xc8] sm:$0xff] %v2386
    %2419 = vst [vmem:[#allocation2 + $0xe0] sm:$0xff] %v2387
    %2420 = vst [vmem:[#allocation2 + $0xe8] sm:$0xff] %v2388
    %2421 = vst [vmem:[#allocation2 + $0x100] sm:$0xff] %v2389
    %2422 = vst [vmem:[#allocation2 + $0x108] sm:$0xff] %v2390
    %2423 = vst [vmem:[#allocation2 + $0x120] sm:$0xff] %v2391
    %2424 = vst [vmem:[#allocation2 + $0x128] sm:$0xff] %v2392
    %2425 = vst [vmem:[#allocation2 + $0x140] sm:$0xff] %v2393
    %2426 = vst [vmem:[#allocation2 + $0x148] sm:$0xff] %v2394
    %2427 = vst [vmem:[#allocation2 + $0x160] sm:$0xff] %v2395
    %2428 = vst [vmem:[#allocation2 + $0x168] sm:$0xff] %v2396
    %2429 = vst [vmem:[#allocation2 + $0x180] sm:$0xff] %v2397
    %2430 = vst [vmem:[#allocation2 + $0x188] sm:$0xff] %v2398
    %2431 = vst [vmem:[#allocation2 + $0x1a0] sm:$0xff] %v2399
    %2432 = vst [vmem:[#allocation2 + $0x1a8] sm:$0xff] %v2400
    %2433 = vst [vmem:[#allocation2 + $0x1c0] sm:$0xff] %v2401
    %2434 = vst [vmem:[#allocation2 + $0x1c8] sm:$0xff] %v2402
    %2435 = vst [vmem:[#allocation2 + $0x1e0] sm:$0xff] %v2403
    %2436 = vst [vmem:[#allocation2 + $0x1e8] sm:$0xff] %v2404
    %2437 = vst [vmem:[#allocation2 + $0x10] sm:$0xff] %v2341
    %2438 = vst [vmem:[#allocation2 + $0x18] sm:$0xff] %v2342
    %2439 = vst [vmem:[#allocation2 + $0x30] sm:$0xff] %v2343
    %2440 = vst [vmem:[#allocation2 + $0x38] sm:$0xff] %v2344
    %2441 = vst [vmem:[#allocation2 + $0x50] sm:$0xff] %v2345
    %2442 = vst [vmem:[#allocation2 + $0x58] sm:$0xff] %v2346
    %2443 = vst [vmem:[#allocation2 + $0x70] sm:$0xff] %v2347
    %2444 = vst [vmem:[#allocation2 + $0x78] sm:$0xff] %v2348
    %2445 = vst [vmem:[#allocation2 + $0x90] sm:$0xff] %v2349
    %2446 = vst [vmem:[#allocation2 + $0x98] sm:$0xff] %v2350
    %2447 = vst [vmem:[#allocation2 + $0xb0] sm:$0xff] %v2351
    %2448 = vst [vmem:[#allocation2 + $0xb8] sm:$0xff] %v2352
    %2449 = vst [vmem:[#allocation2 + $0xd0] sm:$0xff] %v2353
    %2450 = vst [vmem:[#allocation2 + $0xd8] sm:$0xff] %v2354
    %2451 = vst [vmem:[#allocation2 + $0xf0] sm:$0xff] %v2355
    %2452 = vst [vmem:[#allocation2 + $0xf8] sm:$0xff] %v2356
    %2453 = vst [vmem:[#allocation2 + $0x110] sm:$0xff] %v2357
    %2454 = vst [vmem:[#allocation2 + $0x118] sm:$0xff] %v2358
    %2455 = vst [vmem:[#allocation2 + $0x130] sm:$0xff] %v2359
    %2456 = vst [vmem:[#allocation2 + $0x138] sm:$0xff] %v2360
    %2457 = vst [vmem:[#allocation2 + $0x150] sm:$0xff] %v2361
    %2458 = vst [vmem:[#allocation2 + $0x158] sm:$0xff] %v2362
    %2459 = vst [vmem:[#allocation2 + $0x170] sm:$0xff] %v2363
    %2460 = vst [vmem:[#allocation2 + $0x178] sm:$0xff] %v2364
    %2461 = vst [vmem:[#allocation2 + $0x190] sm:$0xff] %v2365
    %2462 = vst [vmem:[#allocation2 + $0x198] sm:$0xff] %v2366
    %2463 = vst [vmem:[#allocation2 + $0x1b0] sm:$0xff] %v2367
    %2464 = vst [vmem:[#allocation2 + $0x1b8] sm:$0xff] %v2368
    %2465 = vst [vmem:[#allocation2 + $0x1d0] sm:$0xff] %v2369
    %2466 = vst [vmem:[#allocation2 + $0x1d8] sm:$0xff] %v2370
    %2467 = vst [vmem:[#allocation2 + $0x1f0] sm:$0xff] %v2371
    %2468 = vst [vmem:[#allocation2 + $0x1f8] sm:$0xff] %v2372
    // Predicated region
    $region10: #{tpu_custom_call.1} parent=1 // pred_check
      _
    $region11: #{tpu_custom_call.1} parent=1 // pred_check_branch
      %2470 = sbr.rel (0) target = $region13
    $region12: #{tpu_custom_call.1} parent=1 // pred_region
      %s2472 = ssub.s32 8192, 8192
      %2473 = vsyncadd [#allocation3], %s2472
      %s2474 = sshll.u32 [#allocation2], 4
      %s2475 = int_to_ptr.vmem [resolvable:$true] %s2474
      %2480 = dma.vmem_to_hbm [thread:$0]  %s2475, 8192, %s2, [#allocation3], 512, 512, 32
    $region13: #{tpu_custom_call.1} parent=1 // pred_fallthru
      _
    // Predicated region
    $region14: #{tpu_custom_call.1} parent=1 // pred_check
      _
    $region15: #{tpu_custom_call.1} parent=1 // pred_check_branch
      %2482 = sbr.rel (0) target = $region17
    $region16: #{tpu_custom_call.1} parent=1 // pred_region
      %2483 = dma.done [#allocation3], 8192
    $region17: #{tpu_custom_call.1} parent=1 // pred_fallthru
      _
    %2484 = vsyncpa [#allocation3], 1

</llo_original>
